<compile_context>
chip_gen: v5e
topology: v5e:2x2
jax: 0.10.0
libtpu: 0.0.40
codegen_flags: <defaults>
</compile_context>

<pallas_src>
import functools

import jax
import jax.numpy as jnp
from jax.experimental import pallas as pl
from jax.experimental.pallas import tpu as pltpu

_LANE = 128
_MAX_TB = 1024  # max batch-tile rows; at D=128 this is well under the VMEM budget


def _cdiv(a, b):
    return -(-a // b)


def _round_up(a, b):
    return _cdiv(a, b) * b


def _num_tensorcores_per_chip():
    """Perf heuristic only (any value is correct): 2 TCs on v4 / v5p / v7x."""
    try:
        kind = jax.devices()[0].device_kind.lower()
    except Exception:
        return 1
    return 2 if ("v7" in kind or "v4" in kind or "v5p" in kind) else 1


def _choose_tiling(batch, n_cores):
    """Largest batch tile <= _MAX_TB such that the grid is a multiple of n_cores."""
    tb = min(_MAX_TB, _cdiv(batch, _LANE * n_cores) * _LANE)
    batch_pad = _round_up(batch, tb * n_cores)
    return tb, batch_pad


# --------------------------------------------------------------------------- #
# Kernel
# --------------------------------------------------------------------------- #
def mlp_kernel(x_ref, w_ref, b_ref, o_ref, *, n_layers):
    """x_ref: (TB, D) bf16; w_ref: (L, D, D) bf16; b_ref: (L, D) f32; o_ref: (TB, D) bf16.

    Weight / bias slabs use constant index_maps, so they are DMA'd once and stay
    VMEM-resident across all grid steps.  Fully unrolled over the L layers.
    """
    h = x_ref[...]                                            # (TB, D) bf16
    for l in range(n_layers):
        # bf16 feed, f32 accumulate on the MXU; bias-add / ReLU in f32 on the VPU.
        z = jnp.dot(h, w_ref[l], preferred_element_type=jnp.float32)
        z = z + b_ref[l:l + 1, :]                             # (1, D) f32 broadcast
        if l != n_layers - 1:
            h = jnp.maximum(z, 0.0).astype(jnp.bfloat16)      # ReLU between layers
        else:
            o_ref[...] = z.astype(o_ref.dtype)                # no final activation


# --------------------------------------------------------------------------- #
# One-time parameter packing (hoisted out of the per-call path)
# --------------------------------------------------------------------------- #
def pack_params(params):
    """params: list of (W_t (in,out) f32, b (1,out) f32), PyTorch-equivalent layers.

    Returns (w_stack bf16 (L,D,D), b_stack f32 (L,D), n_in, n_out) with every
    layer zero-padded to the common lane-dense width D (multiple of 128).
    """
    n_layers = len(params)
    n_in = params[0][0].shape[0]
    n_out = params[-1][0].shape[1]
    dims = [n_in] + [w.shape[1] for (w, _) in params]
    D = _round_up(max(max(dims), _LANE), _LANE)

    w_stack = jnp.zeros((n_layers, D, D), jnp.float32)
    b_stack = jnp.zeros((n_layers, D), jnp.float32)   # padded bias lanes stay zero
    for l, (w, b) in enumerate(params):
        w_stack = w_stack.at[l, : w.shape[0], : w.shape[1]].set(w)
        b_stack = b_stack.at[l, : b.shape[1]].set(b[0])
    return w_stack.astype(jnp.bfloat16), b_stack, n_in, n_out


# --------------------------------------------------------------------------- #
# Forward
# --------------------------------------------------------------------------- #
@functools.partial(jax.jit, static_argnames=("tb", "batch_pad", "n_out"))
def _forward(x, w_stack, b_stack, *, tb, batch_pad, n_out):
    n_layers, D, _ = w_stack.shape
    batch, n_in = x.shape

    # bf16 input, feature-padded to the lane-dense slab width D.
    xp = jnp.pad(x.astype(jnp.bfloat16),
                 ((0, batch_pad - batch), (0, D - n_in)))

    out = pl.pallas_call(
        functools.partial(mlp_kernel, n_layers=n_layers),
        out_shape=jax.ShapeDtypeStruct((batch_pad, D), jnp.bfloat16),
        grid=(batch_pad // tb,),
        in_specs=[
            pl.BlockSpec((tb, D), lambda i: (i, 0)),            # x tile, per step
            pl.BlockSpec((n_layers, D, D), lambda i: (0, 0, 0)),  # weights, resident
            pl.BlockSpec((n_layers, D), lambda i: (0, 0)),       # biases, resident
        ],
        out_specs=pl.BlockSpec((tb, D), lambda i: (i, 0)),
        compiler_params=pltpu.CompilerParams(
            dimension_semantics=("parallel",)),
    )(xp, w_stack, b_stack)

    # Slice off batch / lane padding; hand callers f32 logits (PyTorch dtype).
    return out[:batch, :n_out].astype(jnp.float32)


def simple_classifier_forward(x, packed, *, tb=None):
    """x: (batch, n_in) f32; packed: output of pack_params."""
    w_stack, b_stack, n_in, n_out = packed
    assert x.shape[1] == n_in
    n_cores = _num_tensorcores_per_chip()
    batch = x.shape[0]
    if tb is None:
        tb, batch_pad = _choose_tiling(batch, n_cores)
    else:
        batch_pad = _round_up(batch, tb * n_cores)
    return _forward(x, w_stack, b_stack, tb=tb, batch_pad=batch_pad, n_out=n_out)


# --------------------------------------------------------------------------- #
# Reference / init / test
# --------------------------------------------------------------------------- #
def init_params(key, n_in, n_out):
    """Deterministic init mimicking PyTorch nn.Linear default U(-1/sqrt(in), 1/sqrt(in))."""
    dims = [n_in, 64, 64, 64, 64, 128, 64, 64, 64, n_out]
    params = []
    for l in range(len(dims) - 1):
        key, kw, kb = jax.random.split(key, 3)
        fan_in, fan_out = dims[l], dims[l + 1]
        bound = 1.0 / jnp.sqrt(jnp.float32(fan_in))
        # stored transposed relative to PyTorch: (in, out)
        w_t = jax.random.uniform(kw, (fan_in, fan_out), jnp.float32, -bound, bound)
        b = jax.random.uniform(kb, (1, fan_out), jnp.float32, -bound, bound)
        params.append((w_t, b))
    return params


def reference_forward(x, params):
    """Pure f32 reference (PyTorch semantics)."""
    h = x
    n_layers = len(params)
    for l, (w, b) in enumerate(params):
        h = h @ w + b
        if l != n_layers - 1:
            h = jnp.maximum(h, 0.0)
    return h


if __name__ == "__main__":
    key = jax.random.PRNGKey(0)
    n_in, n_out = 32, 10
    batch = 256

    key, kx, kp = jax.random.split(key, 3)
    x = jax.random.normal(kx, (batch, n_in), jnp.float32)
    params = init_params(kp, n_in, n_out)

    packed = pack_params(params)                      # one-time prep (hoisted)
    logits = simple_classifier_forward(x, packed)     # auto tb: 1 step on v5e/v6e, 2 on v7x
    logits = jax.block_until_ready(logits)

    ref = reference_forward(x, params)
    assert logits.shape == (batch, n_out)
    # bf16 MXU feed / bf16 activations / bf16 output store (f32 accumulation)
    # -> looser than a pure-f32 compare.
    max_err = float(jnp.max(jnp.abs(logits - ref)))
    assert jnp.allclose(logits, ref, atol=3e-2, rtol=3e-2), max_err

    print("KERNEL_OK")
</pallas_src>

<mosaic_0001>
module attributes {stable_mosaic.version = 11 : i64} {
  func.func @mlp_kernel(%arg0: i32, %arg1: memref<256x128xbf16, #tpu.memory_space<vmem>>, %arg2: memref<9x128x128xbf16, #tpu.memory_space<vmem>>, %arg3: memref<9x128xf32, #tpu.memory_space<vmem>>, %arg4: memref<256x128xbf16, #tpu.memory_space<vmem>>) attributes {dimension_semantics = [#tpu.dimension_semantics<parallel>], iteration_bounds = array<i64: 1>, scalar_prefetch = 0 : i64, scratch_operands = 0 : i64, tpu.core_type = #tpu.core_type<tc>, window_params = [{transform_indices = @transform_0, window_bounds = array<i64: 256, 128>}, {pipeline_mode = #tpu.pipeline_mode<synchronous>, transform_indices = @transform_1, window_bounds = array<i64: 9, 128, 128>}, {pipeline_mode = #tpu.pipeline_mode<synchronous>, transform_indices = @transform_2, window_bounds = array<i64: 9, 128>}, {transform_indices = @transform_3, window_bounds = array<i64: 256, 128>}]} {
    %c0 = arith.constant 0 : index
    %c0_0 = arith.constant 0 : index
    %0 = vector.load %arg1[%c0, %c0_0] : memref<256x128xbf16, #tpu.memory_space<vmem>>, vector<256x128xbf16>
    %c0_1 = arith.constant 0 : index
    %c0_2 = arith.constant 0 : index
    %c0_3 = arith.constant 0 : index
    %1 = vector.load %arg2[%c0_1, %c0_2, %c0_3] : memref<9x128x128xbf16, #tpu.memory_space<vmem>>, vector<1x128x128xbf16>
    %2 = vector.shape_cast %1 : vector<1x128x128xbf16> to vector<128x128xbf16>
    %cst = arith.constant dense<0.000000e+00> : vector<256x128xf32>
    %3 = tpu.matmul %0, %2, %cst {dimension_numbers = #tpu.dot_dimension_numbers<[1], [0], [0], [1], [0, 0, 1, 1], [], []>} : vector<256x128xbf16>, vector<128x128xbf16>, vector<256x128xf32> -> vector<256x128xf32>
    %c0_4 = arith.constant 0 : index
    %c0_5 = arith.constant 0 : index
    %4 = vector.load %arg3[%c0_4, %c0_5] : memref<9x128xf32, #tpu.memory_space<vmem>>, vector<1x128xf32>
    %5 = vector.broadcast %4 : vector<1x128xf32> to vector<256x128xf32>
    %6 = arith.addf %3, %5 : vector<256x128xf32>
    %cst_6 = arith.constant 0.000000e+00 : f32
    %7 = vector.broadcast %cst_6 : f32 to vector<256x128xf32>
    %8 = arith.maximumf %6, %7 : vector<256x128xf32>
    %9 = arith.truncf %8 : vector<256x128xf32> to vector<256x128xbf16>
    %c1 = arith.constant 1 : index
    %c0_7 = arith.constant 0 : index
    %c0_8 = arith.constant 0 : index
    %10 = vector.load %arg2[%c1, %c0_7, %c0_8] : memref<9x128x128xbf16, #tpu.memory_space<vmem>>, vector<1x128x128xbf16>
    %11 = vector.shape_cast %10 : vector<1x128x128xbf16> to vector<128x128xbf16>
    %cst_9 = arith.constant dense<0.000000e+00> : vector<256x128xf32>
    %12 = tpu.matmul %9, %11, %cst_9 {dimension_numbers = #tpu.dot_dimension_numbers<[1], [0], [0], [1], [0, 0, 1, 1], [], []>} : vector<256x128xbf16>, vector<128x128xbf16>, vector<256x128xf32> -> vector<256x128xf32>
    %c1_10 = arith.constant 1 : index
    %c0_11 = arith.constant 0 : index
    %13 = vector.load %arg3[%c1_10, %c0_11] : memref<9x128xf32, #tpu.memory_space<vmem>>, vector<1x128xf32>
    %14 = vector.broadcast %13 : vector<1x128xf32> to vector<256x128xf32>
    %15 = arith.addf %12, %14 : vector<256x128xf32>
    %cst_12 = arith.constant 0.000000e+00 : f32
    %16 = vector.broadcast %cst_12 : f32 to vector<256x128xf32>
    %17 = arith.maximumf %15, %16 : vector<256x128xf32>
    %18 = arith.truncf %17 : vector<256x128xf32> to vector<256x128xbf16>
    %c2 = arith.constant 2 : index
    %c0_13 = arith.constant 0 : index
    %c0_14 = arith.constant 0 : index
    %19 = vector.load %arg2[%c2, %c0_13, %c0_14] : memref<9x128x128xbf16, #tpu.memory_space<vmem>>, vector<1x128x128xbf16>
    %20 = vector.shape_cast %19 : vector<1x128x128xbf16> to vector<128x128xbf16>
    %cst_15 = arith.constant dense<0.000000e+00> : vector<256x128xf32>
    %21 = tpu.matmul %18, %20, %cst_15 {dimension_numbers = #tpu.dot_dimension_numbers<[1], [0], [0], [1], [0, 0, 1, 1], [], []>} : vector<256x128xbf16>, vector<128x128xbf16>, vector<256x128xf32> -> vector<256x128xf32>
    %c2_16 = arith.constant 2 : index
    %c0_17 = arith.constant 0 : index
    %22 = vector.load %arg3[%c2_16, %c0_17] : memref<9x128xf32, #tpu.memory_space<vmem>>, vector<1x128xf32>
    %23 = vector.broadcast %22 : vector<1x128xf32> to vector<256x128xf32>
    %24 = arith.addf %21, %23 : vector<256x128xf32>
    %cst_18 = arith.constant 0.000000e+00 : f32
    %25 = vector.broadcast %cst_18 : f32 to vector<256x128xf32>
    %26 = arith.maximumf %24, %25 : vector<256x128xf32>
    %27 = arith.truncf %26 : vector<256x128xf32> to vector<256x128xbf16>
    %c3 = arith.constant 3 : index
    %c0_19 = arith.constant 0 : index
    %c0_20 = arith.constant 0 : index
    %28 = vector.load %arg2[%c3, %c0_19, %c0_20] : memref<9x128x128xbf16, #tpu.memory_space<vmem>>, vector<1x128x128xbf16>
    %29 = vector.shape_cast %28 : vector<1x128x128xbf16> to vector<128x128xbf16>
    %cst_21 = arith.constant dense<0.000000e+00> : vector<256x128xf32>
    %30 = tpu.matmul %27, %29, %cst_21 {dimension_numbers = #tpu.dot_dimension_numbers<[1], [0], [0], [1], [0, 0, 1, 1], [], []>} : vector<256x128xbf16>, vector<128x128xbf16>, vector<256x128xf32> -> vector<256x128xf32>
    %c3_22 = arith.constant 3 : index
    %c0_23 = arith.constant 0 : index
    %31 = vector.load %arg3[%c3_22, %c0_23] : memref<9x128xf32, #tpu.memory_space<vmem>>, vector<1x128xf32>
    %32 = vector.broadcast %31 : vector<1x128xf32> to vector<256x128xf32>
    %33 = arith.addf %30, %32 : vector<256x128xf32>
    %cst_24 = arith.constant 0.000000e+00 : f32
    %34 = vector.broadcast %cst_24 : f32 to vector<256x128xf32>
    %35 = arith.maximumf %33, %34 : vector<256x128xf32>
    %36 = arith.truncf %35 : vector<256x128xf32> to vector<256x128xbf16>
    %c4 = arith.constant 4 : index
    %c0_25 = arith.constant 0 : index
    %c0_26 = arith.constant 0 : index
    %37 = vector.load %arg2[%c4, %c0_25, %c0_26] : memref<9x128x128xbf16, #tpu.memory_space<vmem>>, vector<1x128x128xbf16>
    %38 = vector.shape_cast %37 : vector<1x128x128xbf16> to vector<128x128xbf16>
    %cst_27 = arith.constant dense<0.000000e+00> : vector<256x128xf32>
    %39 = tpu.matmul %36, %38, %cst_27 {dimension_numbers = #tpu.dot_dimension_numbers<[1], [0], [0], [1], [0, 0, 1, 1], [], []>} : vector<256x128xbf16>, vector<128x128xbf16>, vector<256x128xf32> -> vector<256x128xf32>
    %c4_28 = arith.constant 4 : index
    %c0_29 = arith.constant 0 : index
    %40 = vector.load %arg3[%c4_28, %c0_29] : memref<9x128xf32, #tpu.memory_space<vmem>>, vector<1x128xf32>
    %41 = vector.broadcast %40 : vector<1x128xf32> to vector<256x128xf32>
    %42 = arith.addf %39, %41 : vector<256x128xf32>
    %cst_30 = arith.constant 0.000000e+00 : f32
    %43 = vector.broadcast %cst_30 : f32 to vector<256x128xf32>
    %44 = arith.maximumf %42, %43 : vector<256x128xf32>
    %45 = arith.truncf %44 : vector<256x128xf32> to vector<256x128xbf16>
    %c5 = arith.constant 5 : index
    %c0_31 = arith.constant 0 : index
    %c0_32 = arith.constant 0 : index
    %46 = vector.load %arg2[%c5, %c0_31, %c0_32] : memref<9x128x128xbf16, #tpu.memory_space<vmem>>, vector<1x128x128xbf16>
    %47 = vector.shape_cast %46 : vector<1x128x128xbf16> to vector<128x128xbf16>
    %cst_33 = arith.constant dense<0.000000e+00> : vector<256x128xf32>
    %48 = tpu.matmul %45, %47, %cst_33 {dimension_numbers = #tpu.dot_dimension_numbers<[1], [0], [0], [1], [0, 0, 1, 1], [], []>} : vector<256x128xbf16>, vector<128x128xbf16>, vector<256x128xf32> -> vector<256x128xf32>
    %c5_34 = arith.constant 5 : index
    %c0_35 = arith.constant 0 : index
    %49 = vector.load %arg3[%c5_34, %c0_35] : memref<9x128xf32, #tpu.memory_space<vmem>>, vector<1x128xf32>
    %50 = vector.broadcast %49 : vector<1x128xf32> to vector<256x128xf32>
    %51 = arith.addf %48, %50 : vector<256x128xf32>
    %cst_36 = arith.constant 0.000000e+00 : f32
    %52 = vector.broadcast %cst_36 : f32 to vector<256x128xf32>
    %53 = arith.maximumf %51, %52 : vector<256x128xf32>
    %54 = arith.truncf %53 : vector<256x128xf32> to vector<256x128xbf16>
    %c6 = arith.constant 6 : index
    %c0_37 = arith.constant 0 : index
    %c0_38 = arith.constant 0 : index
    %55 = vector.load %arg2[%c6, %c0_37, %c0_38] : memref<9x128x128xbf16, #tpu.memory_space<vmem>>, vector<1x128x128xbf16>
    %56 = vector.shape_cast %55 : vector<1x128x128xbf16> to vector<128x128xbf16>
    %cst_39 = arith.constant dense<0.000000e+00> : vector<256x128xf32>
    %57 = tpu.matmul %54, %56, %cst_39 {dimension_numbers = #tpu.dot_dimension_numbers<[1], [0], [0], [1], [0, 0, 1, 1], [], []>} : vector<256x128xbf16>, vector<128x128xbf16>, vector<256x128xf32> -> vector<256x128xf32>
    %c6_40 = arith.constant 6 : index
    %c0_41 = arith.constant 0 : index
    %58 = vector.load %arg3[%c6_40, %c0_41] : memref<9x128xf32, #tpu.memory_space<vmem>>, vector<1x128xf32>
    %59 = vector.broadcast %58 : vector<1x128xf32> to vector<256x128xf32>
    %60 = arith.addf %57, %59 : vector<256x128xf32>
    %cst_42 = arith.constant 0.000000e+00 : f32
    %61 = vector.broadcast %cst_42 : f32 to vector<256x128xf32>
    %62 = arith.maximumf %60, %61 : vector<256x128xf32>
    %63 = arith.truncf %62 : vector<256x128xf32> to vector<256x128xbf16>
    %c7 = arith.constant 7 : index
    %c0_43 = arith.constant 0 : index
    %c0_44 = arith.constant 0 : index
    %64 = vector.load %arg2[%c7, %c0_43, %c0_44] : memref<9x128x128xbf16, #tpu.memory_space<vmem>>, vector<1x128x128xbf16>
    %65 = vector.shape_cast %64 : vector<1x128x128xbf16> to vector<128x128xbf16>
    %cst_45 = arith.constant dense<0.000000e+00> : vector<256x128xf32>
    %66 = tpu.matmul %63, %65, %cst_45 {dimension_numbers = #tpu.dot_dimension_numbers<[1], [0], [0], [1], [0, 0, 1, 1], [], []>} : vector<256x128xbf16>, vector<128x128xbf16>, vector<256x128xf32> -> vector<256x128xf32>
    %c7_46 = arith.constant 7 : index
    %c0_47 = arith.constant 0 : index
    %67 = vector.load %arg3[%c7_46, %c0_47] : memref<9x128xf32, #tpu.memory_space<vmem>>, vector<1x128xf32>
    %68 = vector.broadcast %67 : vector<1x128xf32> to vector<256x128xf32>
    %69 = arith.addf %66, %68 : vector<256x128xf32>
    %cst_48 = arith.constant 0.000000e+00 : f32
    %70 = vector.broadcast %cst_48 : f32 to vector<256x128xf32>
    %71 = arith.maximumf %69, %70 : vector<256x128xf32>
    %72 = arith.truncf %71 : vector<256x128xf32> to vector<256x128xbf16>
    %c8 = arith.constant 8 : index
    %c0_49 = arith.constant 0 : index
    %c0_50 = arith.constant 0 : index
    %73 = vector.load %arg2[%c8, %c0_49, %c0_50] : memref<9x128x128xbf16, #tpu.memory_space<vmem>>, vector<1x128x128xbf16>
    %74 = vector.shape_cast %73 : vector<1x128x128xbf16> to vector<128x128xbf16>
    %cst_51 = arith.constant dense<0.000000e+00> : vector<256x128xf32>
    %75 = tpu.matmul %72, %74, %cst_51 {dimension_numbers = #tpu.dot_dimension_numbers<[1], [0], [0], [1], [0, 0, 1, 1], [], []>} : vector<256x128xbf16>, vector<128x128xbf16>, vector<256x128xf32> -> vector<256x128xf32>
    %c8_52 = arith.constant 8 : index
    %c0_53 = arith.constant 0 : index
    %76 = vector.load %arg3[%c8_52, %c0_53] : memref<9x128xf32, #tpu.memory_space<vmem>>, vector<1x128xf32>
    %77 = vector.broadcast %76 : vector<1x128xf32> to vector<256x128xf32>
    %78 = arith.addf %75, %77 : vector<256x128xf32>
    %79 = arith.truncf %78 : vector<256x128xf32> to vector<256x128xbf16>
    %c0_54 = arith.constant 0 : index
    %c0_55 = arith.constant 0 : index
    %80 = vector.load %arg4[%c0_54, %c0_55] : memref<256x128xbf16, #tpu.memory_space<vmem>>, vector<256x128xbf16>
    tpu.vector_store %arg4[%c0_54, %c0_55], %79 {strides = array<i32>} : memref<256x128xbf16, #tpu.memory_space<vmem>>, vector<256x128xbf16>,
    return
  }
  func.func @transform_0(%arg0: i32) -> (i32, i32) {
    %c0_i32 = arith.constant 0 : i32
    %c0_i32_0 = arith.constant 0 : i32
    return %arg0, %c0_i32 : i32, i32
  }
  func.func @transform_1(%arg0: i32) -> (i32, i32, i32) {
    %c0_i32 = arith.constant 0 : i32
    %c0_i32_0 = arith.constant 0 : i32
    %c0_i32_1 = arith.constant 0 : i32
    %c0_i32_2 = arith.constant 0 : i32
    return %c0_i32, %c0_i32_0, %c0_i32_1 : i32, i32, i32
  }
  func.func @transform_2(%arg0: i32) -> (i32, i32) {
    %c0_i32 = arith.constant 0 : i32
    %c0_i32_0 = arith.constant 0 : i32
    %c0_i32_1 = arith.constant 0 : i32
    return %c0_i32, %c0_i32_0 : i32, i32
  }
  func.func @transform_3(%arg0: i32) -> (i32, i32) {
    %c0_i32 = arith.constant 0 : i32
    %c0_i32_0 = arith.constant 0 : i32
    return %arg0, %c0_i32 : i32, i32
  }
}

</mosaic_0001>

<llo_original>
// kernel: _forward.1
$region0: #{_forward.1}
  #allocation0 [shape = 'u32[]', space=smem, size = 0x4, offset = 0x4, fixed_abs, tag = 'smem constant byte address 0x4 - core index']
  #allocation1 [shape = 'u32[72,128]{1,0:T(1,128)}', space=vmem, size = 0x9000, scoped, tag = 'internal scratch']
  %s0 = inlined_call_operand.vmem [shape: bf16[256,128], index: 0, kind: input, shape index: {}]
  %s1 = inlined_call_operand.hbm [shape: bf16[9,128,128], index: 1, kind: input, shape index: {}]
  %s2 = inlined_call_operand.vmem [shape: f32[9,128], index: 2, kind: input, shape index: {}]
  %s3 = inlined_call_operand.vmem [shape: bf16[256,128], index: 3, kind: output, shape index: {}]
  %s4 = sld [smem:[#allocation0]]
  $region26: #{_forward.1} parent=0
    _
  %s6 = ssub.s32 1, %s4
  %s7 = scalar_select 0, %s6, %s4
  $region1: #{_forward.1} parent=0
    #allocation2 [shape = 'u8[294912]{0}', space=vmem, size = 0x48000, scoped, tag = 'input window, operand 1, single buffered']
    #allocation3 [shape = 's32[1]{0}', space=sflag, size = 0x4, scoped, tag = 'scoped memory for _forward.1']
    %8 = vsyncpa [#allocation3], 0
    // Predicated region
    $region2: #{_forward.1} parent=1 // pred_check
      _
    $region3: #{_forward.1} parent=1 // pred_check_branch
      %10 = sbr.rel (0) target = $region5
    $region4: #{_forward.1} parent=1 // pred_region
      _
    $region5: #{_forward.1} parent=1 // pred_fallthru
      _
    // Predicated region
    $region6: #{_forward.1} parent=1 // pred_check
      _
    $region7: #{_forward.1} parent=1 // pred_check_branch
      %12 = sbr.rel (0) target = $region9
    $region8: #{_forward.1} parent=1 // pred_region
      %14 = vsyncadd [#allocation3], 0
      %s15 = sshll.u32 %s1, 4
      %s16 = int_to_ptr.hbm [resolvable:$true] %s15
      %s17 = sshll.u32 [#allocation2], 4
      %s18 = int_to_ptr.vmem [resolvable:$true] %s17
      %23 = dma.hbm_to_vmem [thread:$0]  %s16, 9216, %s18, [#allocation3], 64, 64, 4
    $region9: #{_forward.1} parent=1 // pred_fallthru
      _
    // Predicated region
    $region10: #{_forward.1} parent=1 // pred_check
      _
    $region11: #{_forward.1} parent=1 // pred_check_branch
      %25 = sbr.rel (0) target = $region13
    $region12: #{_forward.1} parent=1 // pred_region
      _
    $region13: #{_forward.1} parent=1 // pred_fallthru
      _
    // Predicated region
    $region14: #{_forward.1} parent=1 // pred_check
      _
    $region15: #{_forward.1} parent=1 // pred_check_branch
      %27 = sbr.rel (0) target = $region17
    $region16: #{_forward.1} parent=1 // pred_region
      %29 = dma.done [#allocation3], 9216
    $region17: #{_forward.1} parent=1 // pred_fallthru
      _
    %v30 = vld [vmem:[%s0] sm:$0xf]
    %v31 = vld [vmem:[%s0 + $0x4] sm:$0xf]
    %v32 = vld [vmem:[%s0 + $0x8] sm:$0xf]
    %v33 = vld [vmem:[%s0 + $0xc] sm:$0xf]
    %v34 = vld [vmem:[%s0 + $0x10] sm:$0xf]
    %v35 = vld [vmem:[%s0 + $0x14] sm:$0xf]
    %v36 = vld [vmem:[%s0 + $0x18] sm:$0xf]
    %v37 = vld [vmem:[%s0 + $0x1c] sm:$0xf]
    %v38 = vld [vmem:[%s0 + $0x20] sm:$0xf]
    %v39 = vld [vmem:[%s0 + $0x24] sm:$0xf]
    %v40 = vld [vmem:[%s0 + $0x28] sm:$0xf]
    %v41 = vld [vmem:[%s0 + $0x2c] sm:$0xf]
    %v42 = vld [vmem:[%s0 + $0x30] sm:$0xf]
    %v43 = vld [vmem:[%s0 + $0x34] sm:$0xf]
    %v44 = vld [vmem:[%s0 + $0x38] sm:$0xf]
    %v45 = vld [vmem:[%s0 + $0x3c] sm:$0xf]
    %v46 = vld [vmem:[%s0 + $0x40] sm:$0xf]
    %v47 = vld [vmem:[%s0 + $0x44] sm:$0xf]
    %v48 = vld [vmem:[%s0 + $0x48] sm:$0xf]
    %v49 = vld [vmem:[%s0 + $0x4c] sm:$0xf]
    %v50 = vld [vmem:[%s0 + $0x50] sm:$0xf]
    %v51 = vld [vmem:[%s0 + $0x54] sm:$0xf]
    %v52 = vld [vmem:[%s0 + $0x58] sm:$0xf]
    %v53 = vld [vmem:[%s0 + $0x5c] sm:$0xf]
    %v54 = vld [vmem:[%s0 + $0x60] sm:$0xf]
    %v55 = vld [vmem:[%s0 + $0x64] sm:$0xf]
    %v56 = vld [vmem:[%s0 + $0x68] sm:$0xf]
    %v57 = vld [vmem:[%s0 + $0x6c] sm:$0xf]
    %v58 = vld [vmem:[%s0 + $0x70] sm:$0xf]
    %v59 = vld [vmem:[%s0 + $0x74] sm:$0xf]
    %v60 = vld [vmem:[%s0 + $0x78] sm:$0xf]
    %v61 = vld [vmem:[%s0 + $0x7c] sm:$0xf]
    %v62 = vld [vmem:[#allocation2] sm:$0xf]
    %v63 = vld [vmem:[#allocation2 + $0x4] sm:$0xf]
    %v64 = vld [vmem:[#allocation2 + $0x8] sm:$0xf]
    %v65 = vld [vmem:[#allocation2 + $0xc] sm:$0xf]
    %v66 = vld [vmem:[#allocation2 + $0x10] sm:$0xf]
    %v67 = vld [vmem:[#allocation2 + $0x14] sm:$0xf]
    %v68 = vld [vmem:[#allocation2 + $0x18] sm:$0xf]
    %v69 = vld [vmem:[#allocation2 + $0x1c] sm:$0xf]
    %v70 = vld [vmem:[#allocation2 + $0x20] sm:$0xf]
    %v71 = vld [vmem:[#allocation2 + $0x24] sm:$0xf]
    %v72 = vld [vmem:[#allocation2 + $0x28] sm:$0xf]
    %v73 = vld [vmem:[#allocation2 + $0x2c] sm:$0xf]
    %v74 = vld [vmem:[#allocation2 + $0x30] sm:$0xf]
    %v75 = vld [vmem:[#allocation2 + $0x34] sm:$0xf]
    %v76 = vld [vmem:[#allocation2 + $0x38] sm:$0xf]
    %v77 = vld [vmem:[#allocation2 + $0x3c] sm:$0xf]
    %v78 = vld [vmem:[%s2] sm:$0x1]
    %v79 = vperm.slane %v78, 0
    %v112 = vunpack.c.l.b16 %v30
    %v113 = vunpack.c.l.b16 %v31
    %v114 = vunpack.c.l.b16 %v32
    %v115 = vunpack.c.l.b16 %v33
    %v116 = vunpack.c.l.b16 %v34
    %v117 = vunpack.c.l.b16 %v35
    %v118 = vunpack.c.l.b16 %v36
    %v119 = vunpack.c.l.b16 %v37
    %v120 = vunpack.c.l.b16 %v38
    %v121 = vunpack.c.l.b16 %v39
    %v122 = vunpack.c.l.b16 %v40
    %v123 = vunpack.c.l.b16 %v41
    %v124 = vunpack.c.l.b16 %v42
    %v125 = vunpack.c.l.b16 %v43
    %v126 = vunpack.c.l.b16 %v44
    %v127 = vunpack.c.l.b16 %v45
    %v128 = vunpack.c.l.b16 %v46
    %v129 = vunpack.c.l.b16 %v47
    %v130 = vunpack.c.l.b16 %v48
    %v131 = vunpack.c.l.b16 %v49
    %v132 = vunpack.c.l.b16 %v50
    %v133 = vunpack.c.l.b16 %v51
    %v134 = vunpack.c.l.b16 %v52
    %v135 = vunpack.c.l.b16 %v53
    %v136 = vunpack.c.l.b16 %v54
    %v137 = vunpack.c.l.b16 %v55
    %v138 = vunpack.c.l.b16 %v56
    %v139 = vunpack.c.l.b16 %v57
    %v140 = vunpack.c.l.b16 %v58
    %v141 = vunpack.c.l.b16 %v59
    %v142 = vunpack.c.l.b16 %v60
    %v143 = vunpack.c.l.b16 %v61
    %v144 = vpack.c.b16 %v113, %v112
    %v145 = vpack.c.b16 %v115, %v114
    %v146 = vpack.c.b16 %v117, %v116
    %v147 = vpack.c.b16 %v119, %v118
    %v148 = vpack.c.b16 %v121, %v120
    %v149 = vpack.c.b16 %v123, %v122
    %v150 = vpack.c.b16 %v125, %v124
    %v151 = vpack.c.b16 %v127, %v126
    %v152 = vpack.c.b16 %v129, %v128
    %v153 = vpack.c.b16 %v131, %v130
    %v154 = vpack.c.b16 %v133, %v132
    %v155 = vpack.c.b16 %v135, %v134
    %v156 = vpack.c.b16 %v137, %v136
    %v157 = vpack.c.b16 %v139, %v138
    %v158 = vpack.c.b16 %v141, %v140
    %v159 = vpack.c.b16 %v143, %v142
    %v192 = vunpack.c.l.b16 %v62
    %v193 = vunpack.c.l.b16 %v63
    %v194 = vunpack.c.l.b16 %v64
    %v195 = vunpack.c.l.b16 %v65
    %v196 = vunpack.c.l.b16 %v66
    %v197 = vunpack.c.l.b16 %v67
    %v198 = vunpack.c.l.b16 %v68
    %v199 = vunpack.c.l.b16 %v69
    %v200 = vunpack.c.l.b16 %v70
    %v201 = vunpack.c.l.b16 %v71
    %v202 = vunpack.c.l.b16 %v72
    %v203 = vunpack.c.l.b16 %v73
    %v204 = vunpack.c.l.b16 %v74
    %v205 = vunpack.c.l.b16 %v75
    %v206 = vunpack.c.l.b16 %v76
    %v207 = vunpack.c.l.b16 %v77
    %v208 = vpack.c.b16 %v193, %v192
    %v209 = vpack.c.b16 %v195, %v194
    %v210 = vpack.c.b16 %v197, %v196
    %v211 = vpack.c.b16 %v199, %v198
    %v212 = vpack.c.b16 %v201, %v200
    %v213 = vpack.c.b16 %v203, %v202
    %v214 = vpack.c.b16 %v205, %v204
    %v215 = vpack.c.b16 %v207, %v206
    %224 = vmatpush.bf16.msra.mxu0 %v215
    %225 = vmatpush.bf16.msra.mxu0 %v214
    %226 = vmatpush.bf16.msra.mxu0 %v213
    %227 = vmatpush.bf16.msra.mxu0 %v212
    %228 = vmatpush.bf16.msra.mxu0 %v211
    %229 = vmatpush.bf16.msra.mxu0 %v210
    %230 = vmatpush.bf16.msra.mxu0 %v209
    %231 = vmatpush.bf16.msra.mxu0 %v208
    %232 = vmatmul.bf16.gmra.mxu0 %v144
    %v233 = vpop.f32.mrf.mxu0
    %v234 = vadd.f32 %v79, %v233
    %v235 = vpop.f32.mrf.mxu0
    %v236 = vadd.f32 %v79, %v235
    %237 = vmatmul.bf16.gmra.mxu0 %v145
    %v238 = vpop.f32.mrf.mxu0
    %v239 = vadd.f32 %v79, %v238
    %v240 = vpop.f32.mrf.mxu0
    %v241 = vadd.f32 %v79, %v240
    %242 = vmatmul.bf16.gmra.mxu0 %v146
    %v243 = vpop.f32.mrf.mxu0
    %v244 = vadd.f32 %v79, %v243
    %v245 = vpop.f32.mrf.mxu0
    %v246 = vadd.f32 %v79, %v245
    %247 = vmatmul.bf16.gmra.mxu0 %v147
    %v248 = vpop.f32.mrf.mxu0
    %v249 = vadd.f32 %v79, %v248
    %v250 = vpop.f32.mrf.mxu0
    %v251 = vadd.f32 %v79, %v250
    %252 = vmatmul.bf16.gmra.mxu0 %v148
    %v253 = vpop.f32.mrf.mxu0
    %v254 = vadd.f32 %v79, %v253
    %v255 = vpop.f32.mrf.mxu0
    %v256 = vadd.f32 %v79, %v255
    %257 = vmatmul.bf16.gmra.mxu0 %v149
    %v258 = vpop.f32.mrf.mxu0
    %v259 = vadd.f32 %v79, %v258
    %v260 = vpop.f32.mrf.mxu0
    %v261 = vadd.f32 %v79, %v260
    %262 = vmatmul.bf16.gmra.mxu0 %v150
    %v263 = vpop.f32.mrf.mxu0
    %v264 = vadd.f32 %v79, %v263
    %v265 = vpop.f32.mrf.mxu0
    %v266 = vadd.f32 %v79, %v265
    %267 = vmatmul.bf16.gmra.mxu0 %v151
    %v268 = vpop.f32.mrf.mxu0
    %v269 = vadd.f32 %v79, %v268
    %v270 = vpop.f32.mrf.mxu0
    %v271 = vadd.f32 %v79, %v270
    %272 = vmatmul.bf16.gmra.mxu0 %v152
    %v273 = vpop.f32.mrf.mxu0
    %v274 = vadd.f32 %v79, %v273
    %v275 = vpop.f32.mrf.mxu0
    %v276 = vadd.f32 %v79, %v275
    %277 = vmatmul.bf16.gmra.mxu0 %v153
    %v278 = vpop.f32.mrf.mxu0
    %v279 = vadd.f32 %v79, %v278
    %v280 = vpop.f32.mrf.mxu0
    %v281 = vadd.f32 %v79, %v280
    %282 = vmatmul.bf16.gmra.mxu0 %v154
    %v283 = vpop.f32.mrf.mxu0
    %v284 = vadd.f32 %v79, %v283
    %v285 = vpop.f32.mrf.mxu0
    %v286 = vadd.f32 %v79, %v285
    %287 = vmatmul.bf16.gmra.mxu0 %v155
    %v288 = vpop.f32.mrf.mxu0
    %v289 = vadd.f32 %v79, %v288
    %v290 = vpop.f32.mrf.mxu0
    %v291 = vadd.f32 %v79, %v290
    %292 = vmatmul.bf16.gmra.mxu0 %v156
    %v293 = vpop.f32.mrf.mxu0
    %v294 = vadd.f32 %v79, %v293
    %v295 = vpop.f32.mrf.mxu0
    %v296 = vadd.f32 %v79, %v295
    %297 = vmatmul.bf16.gmra.mxu0 %v157
    %v298 = vpop.f32.mrf.mxu0
    %v299 = vadd.f32 %v79, %v298
    %v300 = vpop.f32.mrf.mxu0
    %v301 = vadd.f32 %v79, %v300
    %302 = vmatmul.bf16.gmra.mxu0 %v158
    %v303 = vpop.f32.mrf.mxu0
    %v304 = vadd.f32 %v79, %v303
    %v305 = vpop.f32.mrf.mxu0
    %v306 = vadd.f32 %v79, %v305
    %307 = vmatmul.bf16.gmra.mxu0 %v159
    %v308 = vpop.f32.mrf.mxu0
    %v309 = vadd.f32 %v79, %v308
    %v310 = vpop.f32.mrf.mxu0
    %v311 = vadd.f32 %v79, %v310
    %312 = vdwg.mxu0
    %v313 = vmax.f32 %v234, 0.0
    %v314 = vmax.f32 %v236, 0.0
    %v315 = vmax.f32 %v239, 0.0
    %v316 = vmax.f32 %v241, 0.0
    %v317 = vmax.f32 %v244, 0.0
    %v318 = vmax.f32 %v246, 0.0
    %v319 = vmax.f32 %v249, 0.0
    %v320 = vmax.f32 %v251, 0.0
    %v321 = vmax.f32 %v254, 0.0
    %v322 = vmax.f32 %v256, 0.0
    %v323 = vmax.f32 %v259, 0.0
    %v324 = vmax.f32 %v261, 0.0
    %v325 = vmax.f32 %v264, 0.0
    %v326 = vmax.f32 %v266, 0.0
    %v327 = vmax.f32 %v269, 0.0
    %v328 = vmax.f32 %v271, 0.0
    %v329 = vmax.f32 %v274, 0.0
    %v330 = vmax.f32 %v276, 0.0
    %v331 = vmax.f32 %v279, 0.0
    %v332 = vmax.f32 %v281, 0.0
    %v333 = vmax.f32 %v284, 0.0
    %v334 = vmax.f32 %v286, 0.0
    %v335 = vmax.f32 %v289, 0.0
    %v336 = vmax.f32 %v291, 0.0
    %v337 = vmax.f32 %v294, 0.0
    %v338 = vmax.f32 %v296, 0.0
    %v339 = vmax.f32 %v299, 0.0
    %v340 = vmax.f32 %v301, 0.0
    %v341 = vmax.f32 %v304, 0.0
    %v342 = vmax.f32 %v306, 0.0
    %v343 = vmax.f32 %v309, 0.0
    %v344 = vmax.f32 %v311, 0.0
    %v345 = vpack.c.bf16 %v314, %v313
    %v346 = vpack.c.bf16 %v316, %v315
    %v347 = vpack.c.bf16 %v318, %v317
    %v348 = vpack.c.bf16 %v320, %v319
    %v349 = vpack.c.bf16 %v322, %v321
    %v350 = vpack.c.bf16 %v324, %v323
    %v351 = vpack.c.bf16 %v326, %v325
    %v352 = vpack.c.bf16 %v328, %v327
    %v353 = vpack.c.bf16 %v330, %v329
    %v354 = vpack.c.bf16 %v332, %v331
    %v355 = vpack.c.bf16 %v334, %v333
    %v356 = vpack.c.bf16 %v336, %v335
    %v357 = vpack.c.bf16 %v338, %v337
    %v358 = vpack.c.bf16 %v340, %v339
    %v359 = vpack.c.bf16 %v342, %v341
    %v360 = vpack.c.bf16 %v344, %v343
    %s361 = scalar_lea.vmem [#allocation2], 64
    %v362 = vld [vmem:[%s361] sm:$0xf]
    %v363 = vld [vmem:[%s361 + $0x4] sm:$0xf]
    %v364 = vld [vmem:[%s361 + $0x8] sm:$0xf]
    %v365 = vld [vmem:[%s361 + $0xc] sm:$0xf]
    %v366 = vld [vmem:[%s361 + $0x10] sm:$0xf]
    %v367 = vld [vmem:[%s361 + $0x14] sm:$0xf]
    %v368 = vld [vmem:[%s361 + $0x18] sm:$0xf]
    %v369 = vld [vmem:[%s361 + $0x1c] sm:$0xf]
    %v370 = vld [vmem:[%s361 + $0x20] sm:$0xf]
    %v371 = vld [vmem:[%s361 + $0x24] sm:$0xf]
    %v372 = vld [vmem:[%s361 + $0x28] sm:$0xf]
    %v373 = vld [vmem:[%s361 + $0x2c] sm:$0xf]
    %v374 = vld [vmem:[%s361 + $0x30] sm:$0xf]
    %v375 = vld [vmem:[%s361 + $0x34] sm:$0xf]
    %v376 = vld [vmem:[%s361 + $0x38] sm:$0xf]
    %v377 = vld [vmem:[%s361 + $0x3c] sm:$0xf]
    %v378 = vld [vmem:[%s2 + $0x1] sm:$0x1]
    %v379 = vperm.slane %v378, 0
    %v396 = vunpack.c.l.b16 %v362
    %v397 = vunpack.c.l.b16 %v363
    %v398 = vunpack.c.l.b16 %v364
    %v399 = vunpack.c.l.b16 %v365
    %v400 = vunpack.c.l.b16 %v366
    %v401 = vunpack.c.l.b16 %v367
    %v402 = vunpack.c.l.b16 %v368
    %v403 = vunpack.c.l.b16 %v369
    %v404 = vunpack.c.l.b16 %v370
    %v405 = vunpack.c.l.b16 %v371
    %v406 = vunpack.c.l.b16 %v372
    %v407 = vunpack.c.l.b16 %v373
    %v408 = vunpack.c.l.b16 %v374
    %v409 = vunpack.c.l.b16 %v375
    %v410 = vunpack.c.l.b16 %v376
    %v411 = vunpack.c.l.b16 %v377
    %v412 = vpack.c.b16 %v397, %v396
    %v413 = vpack.c.b16 %v399, %v398
    %v414 = vpack.c.b16 %v401, %v400
    %v415 = vpack.c.b16 %v403, %v402
    %v416 = vpack.c.b16 %v405, %v404
    %v417 = vpack.c.b16 %v407, %v406
    %v418 = vpack.c.b16 %v409, %v408
    %v419 = vpack.c.b16 %v411, %v410
    %428 = vmatpush.bf16.msra.mxu0 %v419
    %429 = vmatpush.bf16.msra.mxu0 %v418
    %430 = vmatpush.bf16.msra.mxu0 %v417
    %431 = vmatpush.bf16.msra.mxu0 %v416
    %432 = vmatpush.bf16.msra.mxu0 %v415
    %433 = vmatpush.bf16.msra.mxu0 %v414
    %434 = vmatpush.bf16.msra.mxu0 %v413
    %435 = vmatpush.bf16.msra.mxu0 %v412
    %436 = vmatmul.bf16.gmra.mxu0 %v345
    %v437 = vpop.f32.mrf.mxu0
    %v438 = vadd.f32 %v379, %v437
    %v439 = vpop.f32.mrf.mxu0
    %v440 = vadd.f32 %v379, %v439
    %441 = vmatmul.bf16.gmra.mxu0 %v346
    %v442 = vpop.f32.mrf.mxu0
    %v443 = vadd.f32 %v379, %v442
    %v444 = vpop.f32.mrf.mxu0
    %v445 = vadd.f32 %v379, %v444
    %446 = vmatmul.bf16.gmra.mxu0 %v347
    %v447 = vpop.f32.mrf.mxu0
    %v448 = vadd.f32 %v379, %v447
    %v449 = vpop.f32.mrf.mxu0
    %v450 = vadd.f32 %v379, %v449
    %451 = vmatmul.bf16.gmra.mxu0 %v348
    %v452 = vpop.f32.mrf.mxu0
    %v453 = vadd.f32 %v379, %v452
    %v454 = vpop.f32.mrf.mxu0
    %v455 = vadd.f32 %v379, %v454
    %456 = vmatmul.bf16.gmra.mxu0 %v349
    %v457 = vpop.f32.mrf.mxu0
    %v458 = vadd.f32 %v379, %v457
    %v459 = vpop.f32.mrf.mxu0
    %v460 = vadd.f32 %v379, %v459
    %461 = vmatmul.bf16.gmra.mxu0 %v350
    %v462 = vpop.f32.mrf.mxu0
    %v463 = vadd.f32 %v379, %v462
    %v464 = vpop.f32.mrf.mxu0
    %v465 = vadd.f32 %v379, %v464
    %466 = vmatmul.bf16.gmra.mxu0 %v351
    %v467 = vpop.f32.mrf.mxu0
    %v468 = vadd.f32 %v379, %v467
    %v469 = vpop.f32.mrf.mxu0
    %v470 = vadd.f32 %v379, %v469
    %471 = vmatmul.bf16.gmra.mxu0 %v352
    %v472 = vpop.f32.mrf.mxu0
    %v473 = vadd.f32 %v379, %v472
    %v474 = vpop.f32.mrf.mxu0
    %v475 = vadd.f32 %v379, %v474
    %476 = vmatmul.bf16.gmra.mxu0 %v353
    %v477 = vpop.f32.mrf.mxu0
    %v478 = vadd.f32 %v379, %v477
    %v479 = vpop.f32.mrf.mxu0
    %v480 = vadd.f32 %v379, %v479
    %481 = vmatmul.bf16.gmra.mxu0 %v354
    %v482 = vpop.f32.mrf.mxu0
    %v483 = vadd.f32 %v379, %v482
    %v484 = vpop.f32.mrf.mxu0
    %v485 = vadd.f32 %v379, %v484
    %486 = vmatmul.bf16.gmra.mxu0 %v355
    %v487 = vpop.f32.mrf.mxu0
    %v488 = vadd.f32 %v379, %v487
    %v489 = vpop.f32.mrf.mxu0
    %v490 = vadd.f32 %v379, %v489
    %491 = vmatmul.bf16.gmra.mxu0 %v356
    %v492 = vpop.f32.mrf.mxu0
    %v493 = vadd.f32 %v379, %v492
    %v494 = vpop.f32.mrf.mxu0
    %v495 = vadd.f32 %v379, %v494
    %496 = vmatmul.bf16.gmra.mxu0 %v357
    %v497 = vpop.f32.mrf.mxu0
    %v498 = vadd.f32 %v379, %v497
    %v499 = vpop.f32.mrf.mxu0
    %v500 = vadd.f32 %v379, %v499
    %501 = vmatmul.bf16.gmra.mxu0 %v358
    %v502 = vpop.f32.mrf.mxu0
    %v503 = vadd.f32 %v379, %v502
    %v504 = vpop.f32.mrf.mxu0
    %v505 = vadd.f32 %v379, %v504
    %506 = vmatmul.bf16.gmra.mxu0 %v359
    %v507 = vpop.f32.mrf.mxu0
    %v508 = vadd.f32 %v379, %v507
    %v509 = vpop.f32.mrf.mxu0
    %v510 = vadd.f32 %v379, %v509
    %511 = vmatmul.bf16.gmra.mxu0 %v360
    %v512 = vpop.f32.mrf.mxu0
    %v513 = vadd.f32 %v379, %v512
    %v514 = vpop.f32.mrf.mxu0
    %v515 = vadd.f32 %v379, %v514
    %516 = vdwg.mxu0
    %v517 = vmax.f32 %v438, 0.0
    %v518 = vmax.f32 %v440, 0.0
    %v519 = vmax.f32 %v443, 0.0
    %v520 = vmax.f32 %v445, 0.0
    %v521 = vmax.f32 %v448, 0.0
    %v522 = vmax.f32 %v450, 0.0
    %v523 = vmax.f32 %v453, 0.0
    %v524 = vmax.f32 %v455, 0.0
    %v525 = vmax.f32 %v458, 0.0
    %v526 = vmax.f32 %v460, 0.0
    %v527 = vmax.f32 %v463, 0.0
    %v528 = vmax.f32 %v465, 0.0
    %v529 = vmax.f32 %v468, 0.0
    %v530 = vmax.f32 %v470, 0.0
    %v531 = vmax.f32 %v473, 0.0
    %v532 = vmax.f32 %v475, 0.0
    %v533 = vmax.f32 %v478, 0.0
    %v534 = vmax.f32 %v480, 0.0
    %v535 = vmax.f32 %v483, 0.0
    %v536 = vmax.f32 %v485, 0.0
    %v537 = vmax.f32 %v488, 0.0
    %v538 = vmax.f32 %v490, 0.0
    %v539 = vmax.f32 %v493, 0.0
    %v540 = vmax.f32 %v495, 0.0
    %v541 = vmax.f32 %v498, 0.0
    %v542 = vmax.f32 %v500, 0.0
    %v543 = vmax.f32 %v503, 0.0
    %v544 = vmax.f32 %v505, 0.0
    %v545 = vmax.f32 %v508, 0.0
    %v546 = vmax.f32 %v510, 0.0
    %v547 = vmax.f32 %v513, 0.0
    %v548 = vmax.f32 %v515, 0.0
    %v549 = vpack.c.bf16 %v518, %v517
    %v550 = vpack.c.bf16 %v520, %v519
    %v551 = vpack.c.bf16 %v522, %v521
    %v552 = vpack.c.bf16 %v524, %v523
    %v553 = vpack.c.bf16 %v526, %v525
    %v554 = vpack.c.bf16 %v528, %v527
    %v555 = vpack.c.bf16 %v530, %v529
    %v556 = vpack.c.bf16 %v532, %v531
    %v557 = vpack.c.bf16 %v534, %v533
    %v558 = vpack.c.bf16 %v536, %v535
    %v559 = vpack.c.bf16 %v538, %v537
    %v560 = vpack.c.bf16 %v540, %v539
    %v561 = vpack.c.bf16 %v542, %v541
    %v562 = vpack.c.bf16 %v544, %v543
    %v563 = vpack.c.bf16 %v546, %v545
    %v564 = vpack.c.bf16 %v548, %v547
    %s565 = scalar_lea.vmem [#allocation2], 128
    %v566 = vld [vmem:[%s565] sm:$0xf]
    %v567 = vld [vmem:[%s565 + $0x4] sm:$0xf]
    %v568 = vld [vmem:[%s565 + $0x8] sm:$0xf]
    %v569 = vld [vmem:[%s565 + $0xc] sm:$0xf]
    %v570 = vld [vmem:[%s565 + $0x10] sm:$0xf]
    %v571 = vld [vmem:[%s565 + $0x14] sm:$0xf]
    %v572 = vld [vmem:[%s565 + $0x18] sm:$0xf]
    %v573 = vld [vmem:[%s565 + $0x1c] sm:$0xf]
    %v574 = vld [vmem:[%s565 + $0x20] sm:$0xf]
    %v575 = vld [vmem:[%s565 + $0x24] sm:$0xf]
    %v576 = vld [vmem:[%s565 + $0x28] sm:$0xf]
    %v577 = vld [vmem:[%s565 + $0x2c] sm:$0xf]
    %v578 = vld [vmem:[%s565 + $0x30] sm:$0xf]
    %v579 = vld [vmem:[%s565 + $0x34] sm:$0xf]
    %v580 = vld [vmem:[%s565 + $0x38] sm:$0xf]
    %v581 = vld [vmem:[%s565 + $0x3c] sm:$0xf]
    %v582 = vld [vmem:[%s2 + $0x2] sm:$0x1]
    %v583 = vperm.slane %v582, 0
    %v600 = vunpack.c.l.b16 %v566
    %v601 = vunpack.c.l.b16 %v567
    %v602 = vunpack.c.l.b16 %v568
    %v603 = vunpack.c.l.b16 %v569
    %v604 = vunpack.c.l.b16 %v570
    %v605 = vunpack.c.l.b16 %v571
    %v606 = vunpack.c.l.b16 %v572
    %v607 = vunpack.c.l.b16 %v573
    %v608 = vunpack.c.l.b16 %v574
    %v609 = vunpack.c.l.b16 %v575
    %v610 = vunpack.c.l.b16 %v576
    %v611 = vunpack.c.l.b16 %v577
    %v612 = vunpack.c.l.b16 %v578
    %v613 = vunpack.c.l.b16 %v579
    %v614 = vunpack.c.l.b16 %v580
    %v615 = vunpack.c.l.b16 %v581
    %v616 = vpack.c.b16 %v601, %v600
    %v617 = vpack.c.b16 %v603, %v602
    %v618 = vpack.c.b16 %v605, %v604
    %v619 = vpack.c.b16 %v607, %v606
    %v620 = vpack.c.b16 %v609, %v608
    %v621 = vpack.c.b16 %v611, %v610
    %v622 = vpack.c.b16 %v613, %v612
    %v623 = vpack.c.b16 %v615, %v614
    %632 = vmatpush.bf16.msra.mxu0 %v623
    %633 = vmatpush.bf16.msra.mxu0 %v622
    %634 = vmatpush.bf16.msra.mxu0 %v621
    %635 = vmatpush.bf16.msra.mxu0 %v620
    %636 = vmatpush.bf16.msra.mxu0 %v619
    %637 = vmatpush.bf16.msra.mxu0 %v618
    %638 = vmatpush.bf16.msra.mxu0 %v617
    %639 = vmatpush.bf16.msra.mxu0 %v616
    %640 = vmatmul.bf16.gmra.mxu0 %v549
    %v641 = vpop.f32.mrf.mxu0
    %v642 = vadd.f32 %v583, %v641
    %v643 = vpop.f32.mrf.mxu0
    %v644 = vadd.f32 %v583, %v643
    %645 = vmatmul.bf16.gmra.mxu0 %v550
    %v646 = vpop.f32.mrf.mxu0
    %v647 = vadd.f32 %v583, %v646
    %v648 = vpop.f32.mrf.mxu0
    %v649 = vadd.f32 %v583, %v648
    %650 = vmatmul.bf16.gmra.mxu0 %v551
    %v651 = vpop.f32.mrf.mxu0
    %v652 = vadd.f32 %v583, %v651
    %v653 = vpop.f32.mrf.mxu0
    %v654 = vadd.f32 %v583, %v653
    %655 = vmatmul.bf16.gmra.mxu0 %v552
    %v656 = vpop.f32.mrf.mxu0
    %v657 = vadd.f32 %v583, %v656
    %v658 = vpop.f32.mrf.mxu0
    %v659 = vadd.f32 %v583, %v658
    %660 = vmatmul.bf16.gmra.mxu0 %v553
    %v661 = vpop.f32.mrf.mxu0
    %v662 = vadd.f32 %v583, %v661
    %v663 = vpop.f32.mrf.mxu0
    %v664 = vadd.f32 %v583, %v663
    %665 = vmatmul.bf16.gmra.mxu0 %v554
    %v666 = vpop.f32.mrf.mxu0
    %v667 = vadd.f32 %v583, %v666
    %v668 = vpop.f32.mrf.mxu0
    %v669 = vadd.f32 %v583, %v668
    %670 = vmatmul.bf16.gmra.mxu0 %v555
    %v671 = vpop.f32.mrf.mxu0
    %v672 = vadd.f32 %v583, %v671
    %v673 = vpop.f32.mrf.mxu0
    %v674 = vadd.f32 %v583, %v673
    %675 = vmatmul.bf16.gmra.mxu0 %v556
    %v676 = vpop.f32.mrf.mxu0
    %v677 = vadd.f32 %v583, %v676
    %v678 = vpop.f32.mrf.mxu0
    %v679 = vadd.f32 %v583, %v678
    %680 = vmatmul.bf16.gmra.mxu0 %v557
    %v681 = vpop.f32.mrf.mxu0
    %v682 = vadd.f32 %v583, %v681
    %v683 = vpop.f32.mrf.mxu0
    %v684 = vadd.f32 %v583, %v683
    %685 = vmatmul.bf16.gmra.mxu0 %v558
    %v686 = vpop.f32.mrf.mxu0
    %v687 = vadd.f32 %v583, %v686
    %v688 = vpop.f32.mrf.mxu0
    %v689 = vadd.f32 %v583, %v688
    %690 = vmatmul.bf16.gmra.mxu0 %v559
    %v691 = vpop.f32.mrf.mxu0
    %v692 = vadd.f32 %v583, %v691
    %v693 = vpop.f32.mrf.mxu0
    %v694 = vadd.f32 %v583, %v693
    %695 = vmatmul.bf16.gmra.mxu0 %v560
    %v696 = vpop.f32.mrf.mxu0
    %v697 = vadd.f32 %v583, %v696
    %v698 = vpop.f32.mrf.mxu0
    %v699 = vadd.f32 %v583, %v698
    %700 = vmatmul.bf16.gmra.mxu0 %v561
    %v701 = vpop.f32.mrf.mxu0
    %v702 = vadd.f32 %v583, %v701
    %v703 = vpop.f32.mrf.mxu0
    %v704 = vadd.f32 %v583, %v703
    %705 = vmatmul.bf16.gmra.mxu0 %v562
    %v706 = vpop.f32.mrf.mxu0
    %v707 = vadd.f32 %v583, %v706
    %v708 = vpop.f32.mrf.mxu0
    %v709 = vadd.f32 %v583, %v708
    %710 = vmatmul.bf16.gmra.mxu0 %v563
    %v711 = vpop.f32.mrf.mxu0
    %v712 = vadd.f32 %v583, %v711
    %v713 = vpop.f32.mrf.mxu0
    %v714 = vadd.f32 %v583, %v713
    %715 = vmatmul.bf16.gmra.mxu0 %v564
    %v716 = vpop.f32.mrf.mxu0
    %v717 = vadd.f32 %v583, %v716
    %v718 = vpop.f32.mrf.mxu0
    %v719 = vadd.f32 %v583, %v718
    %720 = vdwg.mxu0
    %v721 = vmax.f32 %v642, 0.0
    %v722 = vmax.f32 %v644, 0.0
    %v723 = vmax.f32 %v647, 0.0
    %v724 = vmax.f32 %v649, 0.0
    %v725 = vmax.f32 %v652, 0.0
    %v726 = vmax.f32 %v654, 0.0
    %v727 = vmax.f32 %v657, 0.0
    %v728 = vmax.f32 %v659, 0.0
    %v729 = vmax.f32 %v662, 0.0
    %v730 = vmax.f32 %v664, 0.0
    %v731 = vmax.f32 %v667, 0.0
    %v732 = vmax.f32 %v669, 0.0
    %v733 = vmax.f32 %v672, 0.0
    %v734 = vmax.f32 %v674, 0.0
    %v735 = vmax.f32 %v677, 0.0
    %v736 = vmax.f32 %v679, 0.0
    %v737 = vmax.f32 %v682, 0.0
    %v738 = vmax.f32 %v684, 0.0
    %v739 = vmax.f32 %v687, 0.0
    %v740 = vmax.f32 %v689, 0.0
    %v741 = vmax.f32 %v692, 0.0
    %v742 = vmax.f32 %v694, 0.0
    %v743 = vmax.f32 %v697, 0.0
    %v744 = vmax.f32 %v699, 0.0
    %v745 = vmax.f32 %v702, 0.0
    %v746 = vmax.f32 %v704, 0.0
    %v747 = vmax.f32 %v707, 0.0
    %v748 = vmax.f32 %v709, 0.0
    %v749 = vmax.f32 %v712, 0.0
    %v750 = vmax.f32 %v714, 0.0
    %v751 = vmax.f32 %v717, 0.0
    %v752 = vmax.f32 %v719, 0.0
    %v753 = vpack.c.bf16 %v722, %v721
    %v754 = vpack.c.bf16 %v724, %v723
    %v755 = vpack.c.bf16 %v726, %v725
    %v756 = vpack.c.bf16 %v728, %v727
    %v757 = vpack.c.bf16 %v730, %v729
    %v758 = vpack.c.bf16 %v732, %v731
    %v759 = vpack.c.bf16 %v734, %v733
    %v760 = vpack.c.bf16 %v736, %v735
    %v761 = vpack.c.bf16 %v738, %v737
    %v762 = vpack.c.bf16 %v740, %v739
    %v763 = vpack.c.bf16 %v742, %v741
    %v764 = vpack.c.bf16 %v744, %v743
    %v765 = vpack.c.bf16 %v746, %v745
    %v766 = vpack.c.bf16 %v748, %v747
    %v767 = vpack.c.bf16 %v750, %v749
    %v768 = vpack.c.bf16 %v752, %v751
    %s769 = scalar_lea.vmem [#allocation2], 192
    %v770 = vld [vmem:[%s769] sm:$0xf]
    %v771 = vld [vmem:[%s769 + $0x4] sm:$0xf]
    %v772 = vld [vmem:[%s769 + $0x8] sm:$0xf]
    %v773 = vld [vmem:[%s769 + $0xc] sm:$0xf]
    %v774 = vld [vmem:[%s769 + $0x10] sm:$0xf]
    %v775 = vld [vmem:[%s769 + $0x14] sm:$0xf]
    %v776 = vld [vmem:[%s769 + $0x18] sm:$0xf]
    %v777 = vld [vmem:[%s769 + $0x1c] sm:$0xf]
    %v778 = vld [vmem:[%s769 + $0x20] sm:$0xf]
    %v779 = vld [vmem:[%s769 + $0x24] sm:$0xf]
    %v780 = vld [vmem:[%s769 + $0x28] sm:$0xf]
    %v781 = vld [vmem:[%s769 + $0x2c] sm:$0xf]
    %v782 = vld [vmem:[%s769 + $0x30] sm:$0xf]
    %v783 = vld [vmem:[%s769 + $0x34] sm:$0xf]
    %v784 = vld [vmem:[%s769 + $0x38] sm:$0xf]
    %v785 = vld [vmem:[%s769 + $0x3c] sm:$0xf]
    %v786 = vld [vmem:[%s2 + $0x3] sm:$0x1]
    %v787 = vperm.slane %v786, 0
    %v804 = vunpack.c.l.b16 %v770
    %v805 = vunpack.c.l.b16 %v771
    %v806 = vunpack.c.l.b16 %v772
    %v807 = vunpack.c.l.b16 %v773
    %v808 = vunpack.c.l.b16 %v774
    %v809 = vunpack.c.l.b16 %v775
    %v810 = vunpack.c.l.b16 %v776
    %v811 = vunpack.c.l.b16 %v777
    %v812 = vunpack.c.l.b16 %v778
    %v813 = vunpack.c.l.b16 %v779
    %v814 = vunpack.c.l.b16 %v780
    %v815 = vunpack.c.l.b16 %v781
    %v816 = vunpack.c.l.b16 %v782
    %v817 = vunpack.c.l.b16 %v783
    %v818 = vunpack.c.l.b16 %v784
    %v819 = vunpack.c.l.b16 %v785
    %v820 = vpack.c.b16 %v805, %v804
    %v821 = vpack.c.b16 %v807, %v806
    %v822 = vpack.c.b16 %v809, %v808
    %v823 = vpack.c.b16 %v811, %v810
    %v824 = vpack.c.b16 %v813, %v812
    %v825 = vpack.c.b16 %v815, %v814
    %v826 = vpack.c.b16 %v817, %v816
    %v827 = vpack.c.b16 %v819, %v818
    %836 = vmatpush.bf16.msra.mxu0 %v827
    %837 = vmatpush.bf16.msra.mxu0 %v826
    %838 = vmatpush.bf16.msra.mxu0 %v825
    %839 = vmatpush.bf16.msra.mxu0 %v824
    %840 = vmatpush.bf16.msra.mxu0 %v823
    %841 = vmatpush.bf16.msra.mxu0 %v822
    %842 = vmatpush.bf16.msra.mxu0 %v821
    %843 = vmatpush.bf16.msra.mxu0 %v820
    %844 = vmatmul.bf16.gmra.mxu0 %v753
    %v845 = vpop.f32.mrf.mxu0
    %v846 = vadd.f32 %v787, %v845
    %v847 = vpop.f32.mrf.mxu0
    %v848 = vadd.f32 %v787, %v847
    %849 = vmatmul.bf16.gmra.mxu0 %v754
    %v850 = vpop.f32.mrf.mxu0
    %v851 = vadd.f32 %v787, %v850
    %v852 = vpop.f32.mrf.mxu0
    %v853 = vadd.f32 %v787, %v852
    %854 = vmatmul.bf16.gmra.mxu0 %v755
    %v855 = vpop.f32.mrf.mxu0
    %v856 = vadd.f32 %v787, %v855
    %v857 = vpop.f32.mrf.mxu0
    %v858 = vadd.f32 %v787, %v857
    %859 = vmatmul.bf16.gmra.mxu0 %v756
    %v860 = vpop.f32.mrf.mxu0
    %v861 = vadd.f32 %v787, %v860
    %v862 = vpop.f32.mrf.mxu0
    %v863 = vadd.f32 %v787, %v862
    %864 = vmatmul.bf16.gmra.mxu0 %v757
    %v865 = vpop.f32.mrf.mxu0
    %v866 = vadd.f32 %v787, %v865
    %v867 = vpop.f32.mrf.mxu0
    %v868 = vadd.f32 %v787, %v867
    %869 = vmatmul.bf16.gmra.mxu0 %v758
    %v870 = vpop.f32.mrf.mxu0
    %v871 = vadd.f32 %v787, %v870
    %v872 = vpop.f32.mrf.mxu0
    %v873 = vadd.f32 %v787, %v872
    %874 = vmatmul.bf16.gmra.mxu0 %v759
    %v875 = vpop.f32.mrf.mxu0
    %v876 = vadd.f32 %v787, %v875
    %v877 = vpop.f32.mrf.mxu0
    %v878 = vadd.f32 %v787, %v877
    %879 = vmatmul.bf16.gmra.mxu0 %v760
    %v880 = vpop.f32.mrf.mxu0
    %v881 = vadd.f32 %v787, %v880
    %v882 = vpop.f32.mrf.mxu0
    %v883 = vadd.f32 %v787, %v882
    %884 = vmatmul.bf16.gmra.mxu0 %v761
    %v885 = vpop.f32.mrf.mxu0
    %v886 = vadd.f32 %v787, %v885
    %v887 = vpop.f32.mrf.mxu0
    %v888 = vadd.f32 %v787, %v887
    %889 = vmatmul.bf16.gmra.mxu0 %v762
    %v890 = vpop.f32.mrf.mxu0
    %v891 = vadd.f32 %v787, %v890
    %v892 = vpop.f32.mrf.mxu0
    %v893 = vadd.f32 %v787, %v892
    %894 = vmatmul.bf16.gmra.mxu0 %v763
    %v895 = vpop.f32.mrf.mxu0
    %v896 = vadd.f32 %v787, %v895
    %v897 = vpop.f32.mrf.mxu0
    %v898 = vadd.f32 %v787, %v897
    %899 = vmatmul.bf16.gmra.mxu0 %v764
    %v900 = vpop.f32.mrf.mxu0
    %v901 = vadd.f32 %v787, %v900
    %v902 = vpop.f32.mrf.mxu0
    %v903 = vadd.f32 %v787, %v902
    %904 = vmatmul.bf16.gmra.mxu0 %v765
    %v905 = vpop.f32.mrf.mxu0
    %v906 = vadd.f32 %v787, %v905
    %v907 = vpop.f32.mrf.mxu0
    %v908 = vadd.f32 %v787, %v907
    %909 = vmatmul.bf16.gmra.mxu0 %v766
    %v910 = vpop.f32.mrf.mxu0
    %v911 = vadd.f32 %v787, %v910
    %v912 = vpop.f32.mrf.mxu0
    %v913 = vadd.f32 %v787, %v912
    %914 = vmatmul.bf16.gmra.mxu0 %v767
    %v915 = vpop.f32.mrf.mxu0
    %v916 = vadd.f32 %v787, %v915
    %v917 = vpop.f32.mrf.mxu0
    %v918 = vadd.f32 %v787, %v917
    %919 = vmatmul.bf16.gmra.mxu0 %v768
    %v920 = vpop.f32.mrf.mxu0
    %v921 = vadd.f32 %v787, %v920
    %v922 = vpop.f32.mrf.mxu0
    %v923 = vadd.f32 %v787, %v922
    %924 = vdwg.mxu0
    %v925 = vmax.f32 %v846, 0.0
    %v926 = vmax.f32 %v848, 0.0
    %v927 = vmax.f32 %v851, 0.0
    %v928 = vmax.f32 %v853, 0.0
    %v929 = vmax.f32 %v856, 0.0
    %v930 = vmax.f32 %v858, 0.0
    %v931 = vmax.f32 %v861, 0.0
    %v932 = vmax.f32 %v863, 0.0
    %v933 = vmax.f32 %v866, 0.0
    %v934 = vmax.f32 %v868, 0.0
    %v935 = vmax.f32 %v871, 0.0
    %v936 = vmax.f32 %v873, 0.0
    %v937 = vmax.f32 %v876, 0.0
    %v938 = vmax.f32 %v878, 0.0
    %v939 = vmax.f32 %v881, 0.0
    %v940 = vmax.f32 %v883, 0.0
    %v941 = vmax.f32 %v886, 0.0
    %v942 = vmax.f32 %v888, 0.0
    %v943 = vmax.f32 %v891, 0.0
    %v944 = vmax.f32 %v893, 0.0
    %v945 = vmax.f32 %v896, 0.0
    %v946 = vmax.f32 %v898, 0.0
    %v947 = vmax.f32 %v901, 0.0
    %v948 = vmax.f32 %v903, 0.0
    %v949 = vmax.f32 %v906, 0.0
    %v950 = vmax.f32 %v908, 0.0
    %v951 = vmax.f32 %v911, 0.0
    %v952 = vmax.f32 %v913, 0.0
    %v953 = vmax.f32 %v916, 0.0
    %v954 = vmax.f32 %v918, 0.0
    %v955 = vmax.f32 %v921, 0.0
    %v956 = vmax.f32 %v923, 0.0
    %v957 = vpack.c.bf16 %v926, %v925
    %v958 = vpack.c.bf16 %v928, %v927
    %v959 = vpack.c.bf16 %v930, %v929
    %v960 = vpack.c.bf16 %v932, %v931
    %v961 = vpack.c.bf16 %v934, %v933
    %v962 = vpack.c.bf16 %v936, %v935
    %v963 = vpack.c.bf16 %v938, %v937
    %v964 = vpack.c.bf16 %v940, %v939
    %v965 = vpack.c.bf16 %v942, %v941
    %v966 = vpack.c.bf16 %v944, %v943
    %v967 = vpack.c.bf16 %v946, %v945
    %v968 = vpack.c.bf16 %v948, %v947
    %v969 = vpack.c.bf16 %v950, %v949
    %v970 = vpack.c.bf16 %v952, %v951
    %v971 = vpack.c.bf16 %v954, %v953
    %v972 = vpack.c.bf16 %v956, %v955
    %s973 = scalar_lea.vmem [#allocation2], 256
    %v974 = vld [vmem:[%s973] sm:$0xf]
    %v975 = vld [vmem:[%s973 + $0x4] sm:$0xf]
    %v976 = vld [vmem:[%s973 + $0x8] sm:$0xf]
    %v977 = vld [vmem:[%s973 + $0xc] sm:$0xf]
    %v978 = vld [vmem:[%s973 + $0x10] sm:$0xf]
    %v979 = vld [vmem:[%s973 + $0x14] sm:$0xf]
    %v980 = vld [vmem:[%s973 + $0x18] sm:$0xf]
    %v981 = vld [vmem:[%s973 + $0x1c] sm:$0xf]
    %v982 = vld [vmem:[%s973 + $0x20] sm:$0xf]
    %v983 = vld [vmem:[%s973 + $0x24] sm:$0xf]
    %v984 = vld [vmem:[%s973 + $0x28] sm:$0xf]
    %v985 = vld [vmem:[%s973 + $0x2c] sm:$0xf]
    %v986 = vld [vmem:[%s973 + $0x30] sm:$0xf]
    %v987 = vld [vmem:[%s973 + $0x34] sm:$0xf]
    %v988 = vld [vmem:[%s973 + $0x38] sm:$0xf]
    %v989 = vld [vmem:[%s973 + $0x3c] sm:$0xf]
    %v990 = vld [vmem:[%s2 + $0x4] sm:$0x1]
    %v991 = vperm.slane %v990, 0
    %v1008 = vunpack.c.l.b16 %v974
    %v1009 = vunpack.c.l.b16 %v975
    %v1010 = vunpack.c.l.b16 %v976
    %v1011 = vunpack.c.l.b16 %v977
    %v1012 = vunpack.c.l.b16 %v978
    %v1013 = vunpack.c.l.b16 %v979
    %v1014 = vunpack.c.l.b16 %v980
    %v1015 = vunpack.c.l.b16 %v981
    %v1016 = vunpack.c.l.b16 %v982
    %v1017 = vunpack.c.l.b16 %v983
    %v1018 = vunpack.c.l.b16 %v984
    %v1019 = vunpack.c.l.b16 %v985
    %v1020 = vunpack.c.l.b16 %v986
    %v1021 = vunpack.c.l.b16 %v987
    %v1022 = vunpack.c.l.b16 %v988
    %v1023 = vunpack.c.l.b16 %v989
    %v1024 = vpack.c.b16 %v1009, %v1008
    %v1025 = vpack.c.b16 %v1011, %v1010
    %v1026 = vpack.c.b16 %v1013, %v1012
    %v1027 = vpack.c.b16 %v1015, %v1014
    %v1028 = vpack.c.b16 %v1017, %v1016
    %v1029 = vpack.c.b16 %v1019, %v1018
    %v1030 = vpack.c.b16 %v1021, %v1020
    %v1031 = vpack.c.b16 %v1023, %v1022
    %1040 = vmatpush.bf16.msra.mxu0 %v1031
    %1041 = vmatpush.bf16.msra.mxu0 %v1030
    %1042 = vmatpush.bf16.msra.mxu0 %v1029
    %1043 = vmatpush.bf16.msra.mxu0 %v1028
    %1044 = vmatpush.bf16.msra.mxu0 %v1027
    %1045 = vmatpush.bf16.msra.mxu0 %v1026
    %1046 = vmatpush.bf16.msra.mxu0 %v1025
    %1047 = vmatpush.bf16.msra.mxu0 %v1024
    %1048 = vmatmul.bf16.gmra.mxu0 %v957
    %v1049 = vpop.f32.mrf.mxu0
    %v1050 = vadd.f32 %v991, %v1049
    %v1051 = vpop.f32.mrf.mxu0
    %v1052 = vadd.f32 %v991, %v1051
    %1053 = vmatmul.bf16.gmra.mxu0 %v958
    %v1054 = vpop.f32.mrf.mxu0
    %v1055 = vadd.f32 %v991, %v1054
    %v1056 = vpop.f32.mrf.mxu0
    %v1057 = vadd.f32 %v991, %v1056
    %1058 = vmatmul.bf16.gmra.mxu0 %v959
    %v1059 = vpop.f32.mrf.mxu0
    %v1060 = vadd.f32 %v991, %v1059
    %v1061 = vpop.f32.mrf.mxu0
    %v1062 = vadd.f32 %v991, %v1061
    %1063 = vmatmul.bf16.gmra.mxu0 %v960
    %v1064 = vpop.f32.mrf.mxu0
    %v1065 = vadd.f32 %v991, %v1064
    %v1066 = vpop.f32.mrf.mxu0
    %v1067 = vadd.f32 %v991, %v1066
    %1068 = vmatmul.bf16.gmra.mxu0 %v961
    %v1069 = vpop.f32.mrf.mxu0
    %v1070 = vadd.f32 %v991, %v1069
    %v1071 = vpop.f32.mrf.mxu0
    %v1072 = vadd.f32 %v991, %v1071
    %1073 = vmatmul.bf16.gmra.mxu0 %v962
    %v1074 = vpop.f32.mrf.mxu0
    %v1075 = vadd.f32 %v991, %v1074
    %v1076 = vpop.f32.mrf.mxu0
    %v1077 = vadd.f32 %v991, %v1076
    %1078 = vmatmul.bf16.gmra.mxu0 %v963
    %v1079 = vpop.f32.mrf.mxu0
    %v1080 = vadd.f32 %v991, %v1079
    %v1081 = vpop.f32.mrf.mxu0
    %v1082 = vadd.f32 %v991, %v1081
    %1083 = vmatmul.bf16.gmra.mxu0 %v964
    %v1084 = vpop.f32.mrf.mxu0
    %v1085 = vadd.f32 %v991, %v1084
    %v1086 = vpop.f32.mrf.mxu0
    %v1087 = vadd.f32 %v991, %v1086
    %1088 = vmatmul.bf16.gmra.mxu0 %v965
    %v1089 = vpop.f32.mrf.mxu0
    %v1090 = vadd.f32 %v991, %v1089
    %v1091 = vpop.f32.mrf.mxu0
    %v1092 = vadd.f32 %v991, %v1091
    %1093 = vmatmul.bf16.gmra.mxu0 %v966
    %v1094 = vpop.f32.mrf.mxu0
    %v1095 = vadd.f32 %v991, %v1094
    %v1096 = vpop.f32.mrf.mxu0
    %v1097 = vadd.f32 %v991, %v1096
    %1098 = vmatmul.bf16.gmra.mxu0 %v967
    %v1099 = vpop.f32.mrf.mxu0
    %v1100 = vadd.f32 %v991, %v1099
    %v1101 = vpop.f32.mrf.mxu0
    %v1102 = vadd.f32 %v991, %v1101
    %1103 = vmatmul.bf16.gmra.mxu0 %v968
    %v1104 = vpop.f32.mrf.mxu0
    %v1105 = vadd.f32 %v991, %v1104
    %v1106 = vpop.f32.mrf.mxu0
    %v1107 = vadd.f32 %v991, %v1106
    %1108 = vmatmul.bf16.gmra.mxu0 %v969
    %v1109 = vpop.f32.mrf.mxu0
    %v1110 = vadd.f32 %v991, %v1109
    %v1111 = vpop.f32.mrf.mxu0
    %v1112 = vadd.f32 %v991, %v1111
    %1113 = vmatmul.bf16.gmra.mxu0 %v970
    %v1114 = vpop.f32.mrf.mxu0
    %v1115 = vadd.f32 %v991, %v1114
    %v1116 = vpop.f32.mrf.mxu0
    %v1117 = vadd.f32 %v991, %v1116
    %1118 = vmatmul.bf16.gmra.mxu0 %v971
    %v1119 = vpop.f32.mrf.mxu0
    %v1120 = vadd.f32 %v991, %v1119
    %v1121 = vpop.f32.mrf.mxu0
    %v1122 = vadd.f32 %v991, %v1121
    %1123 = vmatmul.bf16.gmra.mxu0 %v972
    %v1124 = vpop.f32.mrf.mxu0
    %v1125 = vadd.f32 %v991, %v1124
    %v1126 = vpop.f32.mrf.mxu0
    %v1127 = vadd.f32 %v991, %v1126
    %1128 = vdwg.mxu0
    %v1129 = vmax.f32 %v1050, 0.0
    %v1130 = vmax.f32 %v1052, 0.0
    %v1131 = vmax.f32 %v1055, 0.0
    %v1132 = vmax.f32 %v1057, 0.0
    %v1133 = vmax.f32 %v1060, 0.0
    %v1134 = vmax.f32 %v1062, 0.0
    %v1135 = vmax.f32 %v1065, 0.0
    %v1136 = vmax.f32 %v1067, 0.0
    %v1137 = vmax.f32 %v1070, 0.0
    %v1138 = vmax.f32 %v1072, 0.0
    %v1139 = vmax.f32 %v1075, 0.0
    %v1140 = vmax.f32 %v1077, 0.0
    %v1141 = vmax.f32 %v1080, 0.0
    %v1142 = vmax.f32 %v1082, 0.0
    %v1143 = vmax.f32 %v1085, 0.0
    %v1144 = vmax.f32 %v1087, 0.0
    %v1145 = vmax.f32 %v1090, 0.0
    %v1146 = vmax.f32 %v1092, 0.0
    %v1147 = vmax.f32 %v1095, 0.0
    %v1148 = vmax.f32 %v1097, 0.0
    %v1149 = vmax.f32 %v1100, 0.0
    %v1150 = vmax.f32 %v1102, 0.0
    %v1151 = vmax.f32 %v1105, 0.0
    %v1152 = vmax.f32 %v1107, 0.0
    %v1153 = vmax.f32 %v1110, 0.0
    %v1154 = vmax.f32 %v1112, 0.0
    %v1155 = vmax.f32 %v1115, 0.0
    %v1156 = vmax.f32 %v1117, 0.0
    %v1157 = vmax.f32 %v1120, 0.0
    %v1158 = vmax.f32 %v1122, 0.0
    %v1159 = vmax.f32 %v1125, 0.0
    %v1160 = vmax.f32 %v1127, 0.0
    %v1161 = vpack.c.bf16 %v1130, %v1129
    %v1162 = vpack.c.bf16 %v1132, %v1131
    %v1163 = vpack.c.bf16 %v1134, %v1133
    %v1164 = vpack.c.bf16 %v1136, %v1135
    %v1165 = vpack.c.bf16 %v1138, %v1137
    %v1166 = vpack.c.bf16 %v1140, %v1139
    %v1167 = vpack.c.bf16 %v1142, %v1141
    %v1168 = vpack.c.bf16 %v1144, %v1143
    %v1169 = vpack.c.bf16 %v1146, %v1145
    %v1170 = vpack.c.bf16 %v1148, %v1147
    %v1171 = vpack.c.bf16 %v1150, %v1149
    %v1172 = vpack.c.bf16 %v1152, %v1151
    %v1173 = vpack.c.bf16 %v1154, %v1153
    %v1174 = vpack.c.bf16 %v1156, %v1155
    %v1175 = vpack.c.bf16 %v1158, %v1157
    %v1176 = vpack.c.bf16 %v1160, %v1159
    %s1177 = scalar_lea.vmem [#allocation2], 320
    %v1178 = vld [vmem:[%s1177] sm:$0xf]
    %v1179 = vld [vmem:[%s1177 + $0x4] sm:$0xf]
    %v1180 = vld [vmem:[%s1177 + $0x8] sm:$0xf]
    %v1181 = vld [vmem:[%s1177 + $0xc] sm:$0xf]
    %v1182 = vld [vmem:[%s1177 + $0x10] sm:$0xf]
    %v1183 = vld [vmem:[%s1177 + $0x14] sm:$0xf]
    %v1184 = vld [vmem:[%s1177 + $0x18] sm:$0xf]
    %v1185 = vld [vmem:[%s1177 + $0x1c] sm:$0xf]
    %v1186 = vld [vmem:[%s1177 + $0x20] sm:$0xf]
    %v1187 = vld [vmem:[%s1177 + $0x24] sm:$0xf]
    %v1188 = vld [vmem:[%s1177 + $0x28] sm:$0xf]
    %v1189 = vld [vmem:[%s1177 + $0x2c] sm:$0xf]
    %v1190 = vld [vmem:[%s1177 + $0x30] sm:$0xf]
    %v1191 = vld [vmem:[%s1177 + $0x34] sm:$0xf]
    %v1192 = vld [vmem:[%s1177 + $0x38] sm:$0xf]
    %v1193 = vld [vmem:[%s1177 + $0x3c] sm:$0xf]
    %v1194 = vld [vmem:[%s2 + $0x5] sm:$0x1]
    %v1195 = vperm.slane %v1194, 0
    %v1212 = vunpack.c.l.b16 %v1178
    %v1213 = vunpack.c.l.b16 %v1179
    %v1214 = vunpack.c.l.b16 %v1180
    %v1215 = vunpack.c.l.b16 %v1181
    %v1216 = vunpack.c.l.b16 %v1182
    %v1217 = vunpack.c.l.b16 %v1183
    %v1218 = vunpack.c.l.b16 %v1184
    %v1219 = vunpack.c.l.b16 %v1185
    %v1220 = vunpack.c.l.b16 %v1186
    %v1221 = vunpack.c.l.b16 %v1187
    %v1222 = vunpack.c.l.b16 %v1188
    %v1223 = vunpack.c.l.b16 %v1189
    %v1224 = vunpack.c.l.b16 %v1190
    %v1225 = vunpack.c.l.b16 %v1191
    %v1226 = vunpack.c.l.b16 %v1192
    %v1227 = vunpack.c.l.b16 %v1193
    %v1228 = vpack.c.b16 %v1213, %v1212
    %v1229 = vpack.c.b16 %v1215, %v1214
    %v1230 = vpack.c.b16 %v1217, %v1216
    %v1231 = vpack.c.b16 %v1219, %v1218
    %v1232 = vpack.c.b16 %v1221, %v1220
    %v1233 = vpack.c.b16 %v1223, %v1222
    %v1234 = vpack.c.b16 %v1225, %v1224
    %v1235 = vpack.c.b16 %v1227, %v1226
    %1244 = vmatpush.bf16.msra.mxu0 %v1235
    %1245 = vmatpush.bf16.msra.mxu0 %v1234
    %1246 = vmatpush.bf16.msra.mxu0 %v1233
    %1247 = vmatpush.bf16.msra.mxu0 %v1232
    %1248 = vmatpush.bf16.msra.mxu0 %v1231
    %1249 = vmatpush.bf16.msra.mxu0 %v1230
    %1250 = vmatpush.bf16.msra.mxu0 %v1229
    %1251 = vmatpush.bf16.msra.mxu0 %v1228
    %1252 = vmatmul.bf16.gmra.mxu0 %v1161
    %v1253 = vpop.f32.mrf.mxu0
    %v1254 = vadd.f32 %v1195, %v1253
    %v1255 = vpop.f32.mrf.mxu0
    %v1256 = vadd.f32 %v1195, %v1255
    %1257 = vmatmul.bf16.gmra.mxu0 %v1162
    %v1258 = vpop.f32.mrf.mxu0
    %v1259 = vadd.f32 %v1195, %v1258
    %v1260 = vpop.f32.mrf.mxu0
    %v1261 = vadd.f32 %v1195, %v1260
    %1262 = vmatmul.bf16.gmra.mxu0 %v1163
    %v1263 = vpop.f32.mrf.mxu0
    %v1264 = vadd.f32 %v1195, %v1263
    %v1265 = vpop.f32.mrf.mxu0
    %v1266 = vadd.f32 %v1195, %v1265
    %1267 = vmatmul.bf16.gmra.mxu0 %v1164
    %v1268 = vpop.f32.mrf.mxu0
    %v1269 = vadd.f32 %v1195, %v1268
    %v1270 = vpop.f32.mrf.mxu0
    %v1271 = vadd.f32 %v1195, %v1270
    %1272 = vmatmul.bf16.gmra.mxu0 %v1165
    %v1273 = vpop.f32.mrf.mxu0
    %v1274 = vadd.f32 %v1195, %v1273
    %v1275 = vpop.f32.mrf.mxu0
    %v1276 = vadd.f32 %v1195, %v1275
    %1277 = vmatmul.bf16.gmra.mxu0 %v1166
    %v1278 = vpop.f32.mrf.mxu0
    %v1279 = vadd.f32 %v1195, %v1278
    %v1280 = vpop.f32.mrf.mxu0
    %v1281 = vadd.f32 %v1195, %v1280
    %1282 = vmatmul.bf16.gmra.mxu0 %v1167
    %v1283 = vpop.f32.mrf.mxu0
    %v1284 = vadd.f32 %v1195, %v1283
    %v1285 = vpop.f32.mrf.mxu0
    %v1286 = vadd.f32 %v1195, %v1285
    %1287 = vmatmul.bf16.gmra.mxu0 %v1168
    %v1288 = vpop.f32.mrf.mxu0
    %v1289 = vadd.f32 %v1195, %v1288
    %v1290 = vpop.f32.mrf.mxu0
    %v1291 = vadd.f32 %v1195, %v1290
    %1292 = vmatmul.bf16.gmra.mxu0 %v1169
    %v1293 = vpop.f32.mrf.mxu0
    %v1294 = vadd.f32 %v1195, %v1293
    %v1295 = vpop.f32.mrf.mxu0
    %v1296 = vadd.f32 %v1195, %v1295
    %1297 = vmatmul.bf16.gmra.mxu0 %v1170
    %v1298 = vpop.f32.mrf.mxu0
    %v1299 = vadd.f32 %v1195, %v1298
    %v1300 = vpop.f32.mrf.mxu0
    %v1301 = vadd.f32 %v1195, %v1300
    %1302 = vmatmul.bf16.gmra.mxu0 %v1171
    %v1303 = vpop.f32.mrf.mxu0
    %v1304 = vadd.f32 %v1195, %v1303
    %v1305 = vpop.f32.mrf.mxu0
    %v1306 = vadd.f32 %v1195, %v1305
    %1307 = vmatmul.bf16.gmra.mxu0 %v1172
    %v1308 = vpop.f32.mrf.mxu0
    %v1309 = vadd.f32 %v1195, %v1308
    %v1310 = vpop.f32.mrf.mxu0
    %v1311 = vadd.f32 %v1195, %v1310
    %1312 = vmatmul.bf16.gmra.mxu0 %v1173
    %v1313 = vpop.f32.mrf.mxu0
    %v1314 = vadd.f32 %v1195, %v1313
    %v1315 = vpop.f32.mrf.mxu0
    %v1316 = vadd.f32 %v1195, %v1315
    %1317 = vmatmul.bf16.gmra.mxu0 %v1174
    %v1318 = vpop.f32.mrf.mxu0
    %v1319 = vadd.f32 %v1195, %v1318
    %v1320 = vpop.f32.mrf.mxu0
    %v1321 = vadd.f32 %v1195, %v1320
    %1322 = vmatmul.bf16.gmra.mxu0 %v1175
    %v1323 = vpop.f32.mrf.mxu0
    %v1324 = vadd.f32 %v1195, %v1323
    %v1325 = vpop.f32.mrf.mxu0
    %v1326 = vadd.f32 %v1195, %v1325
    %1327 = vmatmul.bf16.gmra.mxu0 %v1176
    %v1328 = vpop.f32.mrf.mxu0
    %v1329 = vadd.f32 %v1195, %v1328
    %v1330 = vpop.f32.mrf.mxu0
    %v1331 = vadd.f32 %v1195, %v1330
    %1332 = vdwg.mxu0
    %v1333 = vmax.f32 %v1254, 0.0
    %v1334 = vmax.f32 %v1256, 0.0
    %v1335 = vmax.f32 %v1259, 0.0
    %v1336 = vmax.f32 %v1261, 0.0
    %v1337 = vmax.f32 %v1264, 0.0
    %v1338 = vmax.f32 %v1266, 0.0
    %v1339 = vmax.f32 %v1269, 0.0
    %v1340 = vmax.f32 %v1271, 0.0
    %v1341 = vmax.f32 %v1274, 0.0
    %v1342 = vmax.f32 %v1276, 0.0
    %v1343 = vmax.f32 %v1279, 0.0
    %v1344 = vmax.f32 %v1281, 0.0
    %v1345 = vmax.f32 %v1284, 0.0
    %v1346 = vmax.f32 %v1286, 0.0
    %v1347 = vmax.f32 %v1289, 0.0
    %v1348 = vmax.f32 %v1291, 0.0
    %v1349 = vmax.f32 %v1294, 0.0
    %v1350 = vmax.f32 %v1296, 0.0
    %v1351 = vmax.f32 %v1299, 0.0
    %v1352 = vmax.f32 %v1301, 0.0
    %v1353 = vmax.f32 %v1304, 0.0
    %v1354 = vmax.f32 %v1306, 0.0
    %v1355 = vmax.f32 %v1309, 0.0
    %v1356 = vmax.f32 %v1311, 0.0
    %v1357 = vmax.f32 %v1314, 0.0
    %v1358 = vmax.f32 %v1316, 0.0
    %v1359 = vmax.f32 %v1319, 0.0
    %v1360 = vmax.f32 %v1321, 0.0
    %v1361 = vmax.f32 %v1324, 0.0
    %v1362 = vmax.f32 %v1326, 0.0
    %v1363 = vmax.f32 %v1329, 0.0
    %v1364 = vmax.f32 %v1331, 0.0
    %v1365 = vpack.c.bf16 %v1334, %v1333
    %v1366 = vpack.c.bf16 %v1336, %v1335
    %v1367 = vpack.c.bf16 %v1338, %v1337
    %v1368 = vpack.c.bf16 %v1340, %v1339
    %v1369 = vpack.c.bf16 %v1342, %v1341
    %v1370 = vpack.c.bf16 %v1344, %v1343
    %v1371 = vpack.c.bf16 %v1346, %v1345
    %v1372 = vpack.c.bf16 %v1348, %v1347
    %v1373 = vpack.c.bf16 %v1350, %v1349
    %v1374 = vpack.c.bf16 %v1352, %v1351
    %v1375 = vpack.c.bf16 %v1354, %v1353
    %v1376 = vpack.c.bf16 %v1356, %v1355
    %v1377 = vpack.c.bf16 %v1358, %v1357
    %v1378 = vpack.c.bf16 %v1360, %v1359
    %v1379 = vpack.c.bf16 %v1362, %v1361
    %v1380 = vpack.c.bf16 %v1364, %v1363
    %s1381 = scalar_lea.vmem [#allocation2], 384
    %v1382 = vld [vmem:[%s1381] sm:$0xf]
    %v1383 = vld [vmem:[%s1381 + $0x4] sm:$0xf]
    %v1384 = vld [vmem:[%s1381 + $0x8] sm:$0xf]
    %v1385 = vld [vmem:[%s1381 + $0xc] sm:$0xf]
    %v1386 = vld [vmem:[%s1381 + $0x10] sm:$0xf]
    %v1387 = vld [vmem:[%s1381 + $0x14] sm:$0xf]
    %v1388 = vld [vmem:[%s1381 + $0x18] sm:$0xf]
    %v1389 = vld [vmem:[%s1381 + $0x1c] sm:$0xf]
    %v1390 = vld [vmem:[%s1381 + $0x20] sm:$0xf]
    %v1391 = vld [vmem:[%s1381 + $0x24] sm:$0xf]
    %v1392 = vld [vmem:[%s1381 + $0x28] sm:$0xf]
    %v1393 = vld [vmem:[%s1381 + $0x2c] sm:$0xf]
    %v1394 = vld [vmem:[%s1381 + $0x30] sm:$0xf]
    %v1395 = vld [vmem:[%s1381 + $0x34] sm:$0xf]
    %v1396 = vld [vmem:[%s1381 + $0x38] sm:$0xf]
    %v1397 = vld [vmem:[%s1381 + $0x3c] sm:$0xf]
    %v1398 = vld [vmem:[%s2 + $0x6] sm:$0x1]
    %v1399 = vperm.slane %v1398, 0
    %v1416 = vunpack.c.l.b16 %v1382
    %v1417 = vunpack.c.l.b16 %v1383
    %v1418 = vunpack.c.l.b16 %v1384
    %v1419 = vunpack.c.l.b16 %v1385
    %v1420 = vunpack.c.l.b16 %v1386
    %v1421 = vunpack.c.l.b16 %v1387
    %v1422 = vunpack.c.l.b16 %v1388
    %v1423 = vunpack.c.l.b16 %v1389
    %v1424 = vunpack.c.l.b16 %v1390
    %v1425 = vunpack.c.l.b16 %v1391
    %v1426 = vunpack.c.l.b16 %v1392
    %v1427 = vunpack.c.l.b16 %v1393
    %v1428 = vunpack.c.l.b16 %v1394
    %v1429 = vunpack.c.l.b16 %v1395
    %v1430 = vunpack.c.l.b16 %v1396
    %v1431 = vunpack.c.l.b16 %v1397
    %v1432 = vpack.c.b16 %v1417, %v1416
    %v1433 = vpack.c.b16 %v1419, %v1418
    %v1434 = vpack.c.b16 %v1421, %v1420
    %v1435 = vpack.c.b16 %v1423, %v1422
    %v1436 = vpack.c.b16 %v1425, %v1424
    %v1437 = vpack.c.b16 %v1427, %v1426
    %v1438 = vpack.c.b16 %v1429, %v1428
    %v1439 = vpack.c.b16 %v1431, %v1430
    %1448 = vmatpush.bf16.msra.mxu0 %v1439
    %1449 = vmatpush.bf16.msra.mxu0 %v1438
    %1450 = vmatpush.bf16.msra.mxu0 %v1437
    %1451 = vmatpush.bf16.msra.mxu0 %v1436
    %1452 = vmatpush.bf16.msra.mxu0 %v1435
    %1453 = vmatpush.bf16.msra.mxu0 %v1434
    %1454 = vmatpush.bf16.msra.mxu0 %v1433
    %1455 = vmatpush.bf16.msra.mxu0 %v1432
    %1456 = vmatmul.bf16.gmra.mxu0 %v1365
    %v1457 = vpop.f32.mrf.mxu0
    %v1458 = vadd.f32 %v1399, %v1457
    %v1459 = vpop.f32.mrf.mxu0
    %v1460 = vadd.f32 %v1399, %v1459
    %1461 = vmatmul.bf16.gmra.mxu0 %v1366
    %v1462 = vpop.f32.mrf.mxu0
    %v1463 = vadd.f32 %v1399, %v1462
    %v1464 = vpop.f32.mrf.mxu0
    %v1465 = vadd.f32 %v1399, %v1464
    %1466 = vmatmul.bf16.gmra.mxu0 %v1367
    %v1467 = vpop.f32.mrf.mxu0
    %v1468 = vadd.f32 %v1399, %v1467
    %v1469 = vpop.f32.mrf.mxu0
    %v1470 = vadd.f32 %v1399, %v1469
    %1471 = vmatmul.bf16.gmra.mxu0 %v1368
    %v1472 = vpop.f32.mrf.mxu0
    %v1473 = vadd.f32 %v1399, %v1472
    %v1474 = vpop.f32.mrf.mxu0
    %v1475 = vadd.f32 %v1399, %v1474
    %1476 = vmatmul.bf16.gmra.mxu0 %v1369
    %v1477 = vpop.f32.mrf.mxu0
    %v1478 = vadd.f32 %v1399, %v1477
    %v1479 = vpop.f32.mrf.mxu0
    %v1480 = vadd.f32 %v1399, %v1479
    %1481 = vmatmul.bf16.gmra.mxu0 %v1370
    %v1482 = vpop.f32.mrf.mxu0
    %v1483 = vadd.f32 %v1399, %v1482
    %v1484 = vpop.f32.mrf.mxu0
    %v1485 = vadd.f32 %v1399, %v1484
    %1486 = vmatmul.bf16.gmra.mxu0 %v1371
    %v1487 = vpop.f32.mrf.mxu0
    %v1488 = vadd.f32 %v1399, %v1487
    %v1489 = vpop.f32.mrf.mxu0
    %v1490 = vadd.f32 %v1399, %v1489
    %1491 = vmatmul.bf16.gmra.mxu0 %v1372
    %v1492 = vpop.f32.mrf.mxu0
    %v1493 = vadd.f32 %v1399, %v1492
    %v1494 = vpop.f32.mrf.mxu0
    %v1495 = vadd.f32 %v1399, %v1494
    %1496 = vmatmul.bf16.gmra.mxu0 %v1373
    %v1497 = vpop.f32.mrf.mxu0
    %v1498 = vadd.f32 %v1399, %v1497
    %v1499 = vpop.f32.mrf.mxu0
    %v1500 = vadd.f32 %v1399, %v1499
    %1501 = vmatmul.bf16.gmra.mxu0 %v1374
    %v1502 = vpop.f32.mrf.mxu0
    %v1503 = vadd.f32 %v1399, %v1502
    %v1504 = vpop.f32.mrf.mxu0
    %v1505 = vadd.f32 %v1399, %v1504
    %1506 = vmatmul.bf16.gmra.mxu0 %v1375
    %v1507 = vpop.f32.mrf.mxu0
    %v1508 = vadd.f32 %v1399, %v1507
    %v1509 = vpop.f32.mrf.mxu0
    %v1510 = vadd.f32 %v1399, %v1509
    %1511 = vmatmul.bf16.gmra.mxu0 %v1376
    %v1512 = vpop.f32.mrf.mxu0
    %v1513 = vadd.f32 %v1399, %v1512
    %v1514 = vpop.f32.mrf.mxu0
    %v1515 = vadd.f32 %v1399, %v1514
    %1516 = vmatmul.bf16.gmra.mxu0 %v1377
    %v1517 = vpop.f32.mrf.mxu0
    %v1518 = vadd.f32 %v1399, %v1517
    %v1519 = vpop.f32.mrf.mxu0
    %v1520 = vadd.f32 %v1399, %v1519
    %1521 = vmatmul.bf16.gmra.mxu0 %v1378
    %v1522 = vpop.f32.mrf.mxu0
    %v1523 = vadd.f32 %v1399, %v1522
    %v1524 = vpop.f32.mrf.mxu0
    %v1525 = vadd.f32 %v1399, %v1524
    %1526 = vmatmul.bf16.gmra.mxu0 %v1379
    %v1527 = vpop.f32.mrf.mxu0
    %v1528 = vadd.f32 %v1399, %v1527
    %v1529 = vpop.f32.mrf.mxu0
    %v1530 = vadd.f32 %v1399, %v1529
    %1531 = vmatmul.bf16.gmra.mxu0 %v1380
    %v1532 = vpop.f32.mrf.mxu0
    %v1533 = vadd.f32 %v1399, %v1532
    %v1534 = vpop.f32.mrf.mxu0
    %v1535 = vadd.f32 %v1399, %v1534
    %1536 = vdwg.mxu0
    %v1537 = vmax.f32 %v1458, 0.0
    %v1538 = vmax.f32 %v1460, 0.0
    %v1539 = vmax.f32 %v1463, 0.0
    %v1540 = vmax.f32 %v1465, 0.0
    %v1541 = vmax.f32 %v1468, 0.0
    %v1542 = vmax.f32 %v1470, 0.0
    %v1543 = vmax.f32 %v1473, 0.0
    %v1544 = vmax.f32 %v1475, 0.0
    %v1545 = vmax.f32 %v1478, 0.0
    %v1546 = vmax.f32 %v1480, 0.0
    %v1547 = vmax.f32 %v1483, 0.0
    %v1548 = vmax.f32 %v1485, 0.0
    %v1549 = vmax.f32 %v1488, 0.0
    %v1550 = vmax.f32 %v1490, 0.0
    %v1551 = vmax.f32 %v1493, 0.0
    %v1552 = vmax.f32 %v1495, 0.0
    %v1553 = vmax.f32 %v1498, 0.0
    %v1554 = vmax.f32 %v1500, 0.0
    %v1555 = vmax.f32 %v1503, 0.0
    %v1556 = vmax.f32 %v1505, 0.0
    %v1557 = vmax.f32 %v1508, 0.0
    %v1558 = vmax.f32 %v1510, 0.0
    %v1559 = vmax.f32 %v1513, 0.0
    %v1560 = vmax.f32 %v1515, 0.0
    %v1561 = vmax.f32 %v1518, 0.0
    %v1562 = vmax.f32 %v1520, 0.0
    %v1563 = vmax.f32 %v1523, 0.0
    %v1564 = vmax.f32 %v1525, 0.0
    %v1565 = vmax.f32 %v1528, 0.0
    %v1566 = vmax.f32 %v1530, 0.0
    %v1567 = vmax.f32 %v1533, 0.0
    %v1568 = vmax.f32 %v1535, 0.0
    %v1569 = vpack.c.bf16 %v1538, %v1537
    %v1570 = vpack.c.bf16 %v1540, %v1539
    %v1571 = vpack.c.bf16 %v1542, %v1541
    %v1572 = vpack.c.bf16 %v1544, %v1543
    %v1573 = vpack.c.bf16 %v1546, %v1545
    %v1574 = vpack.c.bf16 %v1548, %v1547
    %v1575 = vpack.c.bf16 %v1550, %v1549
    %v1576 = vpack.c.bf16 %v1552, %v1551
    %v1577 = vpack.c.bf16 %v1554, %v1553
    %v1578 = vpack.c.bf16 %v1556, %v1555
    %v1579 = vpack.c.bf16 %v1558, %v1557
    %v1580 = vpack.c.bf16 %v1560, %v1559
    %v1581 = vpack.c.bf16 %v1562, %v1561
    %v1582 = vpack.c.bf16 %v1564, %v1563
    %v1583 = vpack.c.bf16 %v1566, %v1565
    %v1584 = vpack.c.bf16 %v1568, %v1567
    %s1585 = scalar_lea.vmem [#allocation2], 448
    %v1586 = vld [vmem:[%s1585] sm:$0xf]
    %v1587 = vld [vmem:[%s1585 + $0x4] sm:$0xf]
    %v1588 = vld [vmem:[%s1585 + $0x8] sm:$0xf]
    %v1589 = vld [vmem:[%s1585 + $0xc] sm:$0xf]
    %v1590 = vld [vmem:[%s1585 + $0x10] sm:$0xf]
    %v1591 = vld [vmem:[%s1585 + $0x14] sm:$0xf]
    %v1592 = vld [vmem:[%s1585 + $0x18] sm:$0xf]
    %v1593 = vld [vmem:[%s1585 + $0x1c] sm:$0xf]
    %v1594 = vld [vmem:[%s1585 + $0x20] sm:$0xf]
    %v1595 = vld [vmem:[%s1585 + $0x24] sm:$0xf]
    %v1596 = vld [vmem:[%s1585 + $0x28] sm:$0xf]
    %v1597 = vld [vmem:[%s1585 + $0x2c] sm:$0xf]
    %v1598 = vld [vmem:[%s1585 + $0x30] sm:$0xf]
    %v1599 = vld [vmem:[%s1585 + $0x34] sm:$0xf]
    %v1600 = vld [vmem:[%s1585 + $0x38] sm:$0xf]
    %v1601 = vld [vmem:[%s1585 + $0x3c] sm:$0xf]
    %v1602 = vld [vmem:[%s2 + $0x7] sm:$0x1]
    %v1603 = vperm.slane %v1602, 0
    %v1620 = vunpack.c.l.b16 %v1586
    %v1621 = vunpack.c.l.b16 %v1587
    %v1622 = vunpack.c.l.b16 %v1588
    %v1623 = vunpack.c.l.b16 %v1589
    %v1624 = vunpack.c.l.b16 %v1590
    %v1625 = vunpack.c.l.b16 %v1591
    %v1626 = vunpack.c.l.b16 %v1592
    %v1627 = vunpack.c.l.b16 %v1593
    %v1628 = vunpack.c.l.b16 %v1594
    %v1629 = vunpack.c.l.b16 %v1595
    %v1630 = vunpack.c.l.b16 %v1596
    %v1631 = vunpack.c.l.b16 %v1597
    %v1632 = vunpack.c.l.b16 %v1598
    %v1633 = vunpack.c.l.b16 %v1599
    %v1634 = vunpack.c.l.b16 %v1600
    %v1635 = vunpack.c.l.b16 %v1601
    %v1636 = vpack.c.b16 %v1621, %v1620
    %v1637 = vpack.c.b16 %v1623, %v1622
    %v1638 = vpack.c.b16 %v1625, %v1624
    %v1639 = vpack.c.b16 %v1627, %v1626
    %v1640 = vpack.c.b16 %v1629, %v1628
    %v1641 = vpack.c.b16 %v1631, %v1630
    %v1642 = vpack.c.b16 %v1633, %v1632
    %v1643 = vpack.c.b16 %v1635, %v1634
    %1652 = vmatpush.bf16.msra.mxu0 %v1643
    %1653 = vmatpush.bf16.msra.mxu0 %v1642
    %1654 = vmatpush.bf16.msra.mxu0 %v1641
    %1655 = vmatpush.bf16.msra.mxu0 %v1640
    %1656 = vmatpush.bf16.msra.mxu0 %v1639
    %1657 = vmatpush.bf16.msra.mxu0 %v1638
    %1658 = vmatpush.bf16.msra.mxu0 %v1637
    %1659 = vmatpush.bf16.msra.mxu0 %v1636
    %1660 = vmatmul.bf16.gmra.mxu0 %v1569
    %v1661 = vpop.f32.mrf.mxu0
    %v1662 = vadd.f32 %v1603, %v1661
    %v1663 = vpop.f32.mrf.mxu0
    %v1664 = vadd.f32 %v1603, %v1663
    %1665 = vmatmul.bf16.gmra.mxu0 %v1570
    %v1666 = vpop.f32.mrf.mxu0
    %v1667 = vadd.f32 %v1603, %v1666
    %v1668 = vpop.f32.mrf.mxu0
    %v1669 = vadd.f32 %v1603, %v1668
    %1670 = vmatmul.bf16.gmra.mxu0 %v1571
    %v1671 = vpop.f32.mrf.mxu0
    %v1672 = vadd.f32 %v1603, %v1671
    %v1673 = vpop.f32.mrf.mxu0
    %v1674 = vadd.f32 %v1603, %v1673
    %1675 = vmatmul.bf16.gmra.mxu0 %v1572
    %v1676 = vpop.f32.mrf.mxu0
    %v1677 = vadd.f32 %v1603, %v1676
    %v1678 = vpop.f32.mrf.mxu0
    %v1679 = vadd.f32 %v1603, %v1678
    %1680 = vmatmul.bf16.gmra.mxu0 %v1573
    %v1681 = vpop.f32.mrf.mxu0
    %v1682 = vadd.f32 %v1603, %v1681
    %v1683 = vpop.f32.mrf.mxu0
    %v1684 = vadd.f32 %v1603, %v1683
    %1685 = vmatmul.bf16.gmra.mxu0 %v1574
    %v1686 = vpop.f32.mrf.mxu0
    %v1687 = vadd.f32 %v1603, %v1686
    %v1688 = vpop.f32.mrf.mxu0
    %v1689 = vadd.f32 %v1603, %v1688
    %1690 = vmatmul.bf16.gmra.mxu0 %v1575
    %v1691 = vpop.f32.mrf.mxu0
    %v1692 = vadd.f32 %v1603, %v1691
    %v1693 = vpop.f32.mrf.mxu0
    %v1694 = vadd.f32 %v1603, %v1693
    %1695 = vmatmul.bf16.gmra.mxu0 %v1576
    %v1696 = vpop.f32.mrf.mxu0
    %v1697 = vadd.f32 %v1603, %v1696
    %v1698 = vpop.f32.mrf.mxu0
    %v1699 = vadd.f32 %v1603, %v1698
    %1700 = vmatmul.bf16.gmra.mxu0 %v1577
    %v1701 = vpop.f32.mrf.mxu0
    %v1702 = vadd.f32 %v1603, %v1701
    %v1703 = vpop.f32.mrf.mxu0
    %v1704 = vadd.f32 %v1603, %v1703
    %1705 = vmatmul.bf16.gmra.mxu0 %v1578
    %v1706 = vpop.f32.mrf.mxu0
    %v1707 = vadd.f32 %v1603, %v1706
    %v1708 = vpop.f32.mrf.mxu0
    %v1709 = vadd.f32 %v1603, %v1708
    %1710 = vmatmul.bf16.gmra.mxu0 %v1579
    %v1711 = vpop.f32.mrf.mxu0
    %v1712 = vadd.f32 %v1603, %v1711
    %v1713 = vpop.f32.mrf.mxu0
    %v1714 = vadd.f32 %v1603, %v1713
    %1715 = vmatmul.bf16.gmra.mxu0 %v1580
    %v1716 = vpop.f32.mrf.mxu0
    %v1717 = vadd.f32 %v1603, %v1716
    %v1718 = vpop.f32.mrf.mxu0
    %v1719 = vadd.f32 %v1603, %v1718
    %1720 = vmatmul.bf16.gmra.mxu0 %v1581
    %v1721 = vpop.f32.mrf.mxu0
    %v1722 = vadd.f32 %v1603, %v1721
    %v1723 = vpop.f32.mrf.mxu0
    %v1724 = vadd.f32 %v1603, %v1723
    %1725 = vmatmul.bf16.gmra.mxu0 %v1582
    %v1726 = vpop.f32.mrf.mxu0
    %v1727 = vadd.f32 %v1603, %v1726
    %v1728 = vpop.f32.mrf.mxu0
    %v1729 = vadd.f32 %v1603, %v1728
    %1730 = vmatmul.bf16.gmra.mxu0 %v1583
    %v1731 = vpop.f32.mrf.mxu0
    %v1732 = vadd.f32 %v1603, %v1731
    %v1733 = vpop.f32.mrf.mxu0
    %v1734 = vadd.f32 %v1603, %v1733
    %1735 = vmatmul.bf16.gmra.mxu0 %v1584
    %v1736 = vpop.f32.mrf.mxu0
    %v1737 = vadd.f32 %v1603, %v1736
    %v1738 = vpop.f32.mrf.mxu0
    %v1739 = vadd.f32 %v1603, %v1738
    %1740 = vdwg.mxu0
    %v1741 = vmax.f32 %v1662, 0.0
    %v1742 = vmax.f32 %v1664, 0.0
    %v1743 = vmax.f32 %v1667, 0.0
    %v1744 = vmax.f32 %v1669, 0.0
    %v1745 = vmax.f32 %v1672, 0.0
    %v1746 = vmax.f32 %v1674, 0.0
    %v1747 = vmax.f32 %v1677, 0.0
    %v1748 = vmax.f32 %v1679, 0.0
    %v1749 = vmax.f32 %v1682, 0.0
    %v1750 = vmax.f32 %v1684, 0.0
    %v1751 = vmax.f32 %v1687, 0.0
    %v1752 = vmax.f32 %v1689, 0.0
    %v1753 = vmax.f32 %v1692, 0.0
    %v1754 = vmax.f32 %v1694, 0.0
    %v1755 = vmax.f32 %v1697, 0.0
    %v1756 = vmax.f32 %v1699, 0.0
    %v1757 = vmax.f32 %v1702, 0.0
    %v1758 = vmax.f32 %v1704, 0.0
    %v1759 = vmax.f32 %v1707, 0.0
    %v1760 = vmax.f32 %v1709, 0.0
    %v1761 = vmax.f32 %v1712, 0.0
    %v1762 = vmax.f32 %v1714, 0.0
    %v1763 = vmax.f32 %v1717, 0.0
    %v1764 = vmax.f32 %v1719, 0.0
    %v1765 = vmax.f32 %v1722, 0.0
    %v1766 = vmax.f32 %v1724, 0.0
    %v1767 = vmax.f32 %v1727, 0.0
    %v1768 = vmax.f32 %v1729, 0.0
    %v1769 = vmax.f32 %v1732, 0.0
    %v1770 = vmax.f32 %v1734, 0.0
    %v1771 = vmax.f32 %v1737, 0.0
    %v1772 = vmax.f32 %v1739, 0.0
    %v1773 = vpack.c.bf16 %v1742, %v1741
    %v1774 = vpack.c.bf16 %v1744, %v1743
    %v1775 = vpack.c.bf16 %v1746, %v1745
    %v1776 = vpack.c.bf16 %v1748, %v1747
    %v1777 = vpack.c.bf16 %v1750, %v1749
    %v1778 = vpack.c.bf16 %v1752, %v1751
    %v1779 = vpack.c.bf16 %v1754, %v1753
    %v1780 = vpack.c.bf16 %v1756, %v1755
    %v1781 = vpack.c.bf16 %v1758, %v1757
    %v1782 = vpack.c.bf16 %v1760, %v1759
    %v1783 = vpack.c.bf16 %v1762, %v1761
    %v1784 = vpack.c.bf16 %v1764, %v1763
    %v1785 = vpack.c.bf16 %v1766, %v1765
    %v1786 = vpack.c.bf16 %v1768, %v1767
    %v1787 = vpack.c.bf16 %v1770, %v1769
    %v1788 = vpack.c.bf16 %v1772, %v1771
    %s1789 = scalar_lea.vmem [#allocation2], 512
    %v1790 = vld [vmem:[%s1789] sm:$0xf]
    %v1791 = vld [vmem:[%s1789 + $0x4] sm:$0xf]
    %v1792 = vld [vmem:[%s1789 + $0x8] sm:$0xf]
    %v1793 = vld [vmem:[%s1789 + $0xc] sm:$0xf]
    %v1794 = vld [vmem:[%s1789 + $0x10] sm:$0xf]
    %v1795 = vld [vmem:[%s1789 + $0x14] sm:$0xf]
    %v1796 = vld [vmem:[%s1789 + $0x18] sm:$0xf]
    %v1797 = vld [vmem:[%s1789 + $0x1c] sm:$0xf]
    %v1798 = vld [vmem:[%s1789 + $0x20] sm:$0xf]
    %v1799 = vld [vmem:[%s1789 + $0x24] sm:$0xf]
    %v1800 = vld [vmem:[%s1789 + $0x28] sm:$0xf]
    %v1801 = vld [vmem:[%s1789 + $0x2c] sm:$0xf]
    %v1802 = vld [vmem:[%s1789 + $0x30] sm:$0xf]
    %v1803 = vld [vmem:[%s1789 + $0x34] sm:$0xf]
    %v1804 = vld [vmem:[%s1789 + $0x38] sm:$0xf]
    %v1805 = vld [vmem:[%s1789 + $0x3c] sm:$0xf]
    %v1806 = vld [vmem:[%s2 + $0x8] sm:$0x1]
    %v1807 = vperm.slane %v1806, 0
    %v1824 = vunpack.c.l.b16 %v1790
    %v1825 = vunpack.c.l.b16 %v1791
    %v1826 = vunpack.c.l.b16 %v1792
    %v1827 = vunpack.c.l.b16 %v1793
    %v1828 = vunpack.c.l.b16 %v1794
    %v1829 = vunpack.c.l.b16 %v1795
    %v1830 = vunpack.c.l.b16 %v1796
    %v1831 = vunpack.c.l.b16 %v1797
    %v1832 = vunpack.c.l.b16 %v1798
    %v1833 = vunpack.c.l.b16 %v1799
    %v1834 = vunpack.c.l.b16 %v1800
    %v1835 = vunpack.c.l.b16 %v1801
    %v1836 = vunpack.c.l.b16 %v1802
    %v1837 = vunpack.c.l.b16 %v1803
    %v1838 = vunpack.c.l.b16 %v1804
    %v1839 = vunpack.c.l.b16 %v1805
    %v1840 = vpack.c.b16 %v1825, %v1824
    %v1841 = vpack.c.b16 %v1827, %v1826
    %v1842 = vpack.c.b16 %v1829, %v1828
    %v1843 = vpack.c.b16 %v1831, %v1830
    %v1844 = vpack.c.b16 %v1833, %v1832
    %v1845 = vpack.c.b16 %v1835, %v1834
    %v1846 = vpack.c.b16 %v1837, %v1836
    %v1847 = vpack.c.b16 %v1839, %v1838
    %1856 = vmatpush.bf16.msra.mxu0 %v1847
    %1857 = vmatpush.bf16.msra.mxu0 %v1846
    %1858 = vmatpush.bf16.msra.mxu0 %v1845
    %1859 = vmatpush.bf16.msra.mxu0 %v1844
    %1860 = vmatpush.bf16.msra.mxu0 %v1843
    %1861 = vmatpush.bf16.msra.mxu0 %v1842
    %1862 = vmatpush.bf16.msra.mxu0 %v1841
    %1863 = vmatpush.bf16.msra.mxu0 %v1840
    %1864 = vmatmul.bf16.gmra.mxu0 %v1773
    %v1865 = vpop.f32.mrf.mxu0
    %v1866 = vadd.f32 %v1807, %v1865
    %v1867 = vpop.f32.mrf.mxu0
    %v1868 = vadd.f32 %v1807, %v1867
    %1869 = vmatmul.bf16.gmra.mxu0 %v1774
    %v1870 = vpop.f32.mrf.mxu0
    %v1871 = vadd.f32 %v1807, %v1870
    %v1872 = vpop.f32.mrf.mxu0
    %v1873 = vadd.f32 %v1807, %v1872
    %1874 = vmatmul.bf16.gmra.mxu0 %v1775
    %v1875 = vpop.f32.mrf.mxu0
    %v1876 = vadd.f32 %v1807, %v1875
    %v1877 = vpop.f32.mrf.mxu0
    %v1878 = vadd.f32 %v1807, %v1877
    %1879 = vmatmul.bf16.gmra.mxu0 %v1776
    %v1880 = vpop.f32.mrf.mxu0
    %v1881 = vadd.f32 %v1807, %v1880
    %v1882 = vpop.f32.mrf.mxu0
    %v1883 = vadd.f32 %v1807, %v1882
    %1884 = vmatmul.bf16.gmra.mxu0 %v1777
    %v1885 = vpop.f32.mrf.mxu0
    %v1886 = vadd.f32 %v1807, %v1885
    %v1887 = vpop.f32.mrf.mxu0
    %v1888 = vadd.f32 %v1807, %v1887
    %1889 = vmatmul.bf16.gmra.mxu0 %v1778
    %v1890 = vpop.f32.mrf.mxu0
    %v1891 = vadd.f32 %v1807, %v1890
    %v1892 = vpop.f32.mrf.mxu0
    %v1893 = vadd.f32 %v1807, %v1892
    %1894 = vmatmul.bf16.gmra.mxu0 %v1779
    %v1895 = vpop.f32.mrf.mxu0
    %v1896 = vadd.f32 %v1807, %v1895
    %v1897 = vpop.f32.mrf.mxu0
    %v1898 = vadd.f32 %v1807, %v1897
    %1899 = vmatmul.bf16.gmra.mxu0 %v1780
    %v1900 = vpop.f32.mrf.mxu0
    %v1901 = vadd.f32 %v1807, %v1900
    %v1902 = vpop.f32.mrf.mxu0
    %v1903 = vadd.f32 %v1807, %v1902
    %1904 = vmatmul.bf16.gmra.mxu0 %v1781
    %v1905 = vpop.f32.mrf.mxu0
    %v1906 = vadd.f32 %v1807, %v1905
    %v1907 = vpop.f32.mrf.mxu0
    %v1908 = vadd.f32 %v1807, %v1907
    %1909 = vmatmul.bf16.gmra.mxu0 %v1782
    %v1910 = vpop.f32.mrf.mxu0
    %v1911 = vadd.f32 %v1807, %v1910
    %v1912 = vpop.f32.mrf.mxu0
    %v1913 = vadd.f32 %v1807, %v1912
    %1914 = vmatmul.bf16.gmra.mxu0 %v1783
    %v1915 = vpop.f32.mrf.mxu0
    %v1916 = vadd.f32 %v1807, %v1915
    %v1917 = vpop.f32.mrf.mxu0
    %v1918 = vadd.f32 %v1807, %v1917
    %1919 = vmatmul.bf16.gmra.mxu0 %v1784
    %v1920 = vpop.f32.mrf.mxu0
    %v1921 = vadd.f32 %v1807, %v1920
    %v1922 = vpop.f32.mrf.mxu0
    %v1923 = vadd.f32 %v1807, %v1922
    %1924 = vmatmul.bf16.gmra.mxu0 %v1785
    %v1925 = vpop.f32.mrf.mxu0
    %v1926 = vadd.f32 %v1807, %v1925
    %v1927 = vpop.f32.mrf.mxu0
    %v1928 = vadd.f32 %v1807, %v1927
    %1929 = vmatmul.bf16.gmra.mxu0 %v1786
    %v1930 = vpop.f32.mrf.mxu0
    %v1931 = vadd.f32 %v1807, %v1930
    %v1932 = vpop.f32.mrf.mxu0
    %v1933 = vadd.f32 %v1807, %v1932
    %1934 = vmatmul.bf16.gmra.mxu0 %v1787
    %v1935 = vpop.f32.mrf.mxu0
    %v1936 = vadd.f32 %v1807, %v1935
    %v1937 = vpop.f32.mrf.mxu0
    %v1938 = vadd.f32 %v1807, %v1937
    %1939 = vmatmul.bf16.gmra.mxu0 %v1788
    %v1940 = vpop.f32.mrf.mxu0
    %v1941 = vadd.f32 %v1807, %v1940
    %v1942 = vpop.f32.mrf.mxu0
    %v1943 = vadd.f32 %v1807, %v1942
    %1944 = vdwg.mxu0
    %v1945 = vpack.c.bf16 %v1866, %v1866
    %v1946 = vpack.c.bf16 %v1868, %v1868
    %v1947 = vpack.c.bf16 %v1871, %v1871
    %v1948 = vpack.c.bf16 %v1873, %v1873
    %v1949 = vpack.c.bf16 %v1876, %v1876
    %v1950 = vpack.c.bf16 %v1878, %v1878
    %v1951 = vpack.c.bf16 %v1881, %v1881
    %v1952 = vpack.c.bf16 %v1883, %v1883
    %v1953 = vpack.c.bf16 %v1886, %v1886
    %v1954 = vpack.c.bf16 %v1888, %v1888
    %v1955 = vpack.c.bf16 %v1891, %v1891
    %v1956 = vpack.c.bf16 %v1893, %v1893
    %v1957 = vpack.c.bf16 %v1896, %v1896
    %v1958 = vpack.c.bf16 %v1898, %v1898
    %v1959 = vpack.c.bf16 %v1901, %v1901
    %v1960 = vpack.c.bf16 %v1903, %v1903
    %v1961 = vpack.c.bf16 %v1906, %v1906
    %v1962 = vpack.c.bf16 %v1908, %v1908
    %v1963 = vpack.c.bf16 %v1911, %v1911
    %v1964 = vpack.c.bf16 %v1913, %v1913
    %v1965 = vpack.c.bf16 %v1916, %v1916
    %v1966 = vpack.c.bf16 %v1918, %v1918
    %v1967 = vpack.c.bf16 %v1921, %v1921
    %v1968 = vpack.c.bf16 %v1923, %v1923
    %v1969 = vpack.c.bf16 %v1926, %v1926
    %v1970 = vpack.c.bf16 %v1928, %v1928
    %v1971 = vpack.c.bf16 %v1931, %v1931
    %v1972 = vpack.c.bf16 %v1933, %v1933
    %v1973 = vpack.c.bf16 %v1936, %v1936
    %v1974 = vpack.c.bf16 %v1938, %v1938
    %v1975 = vpack.c.bf16 %v1941, %v1941
    %v1976 = vpack.c.bf16 %v1943, %v1943
    %1977 = vst [vmem:[%s3] sm:$0xf] %v1945
    %1978 = vst [vmem:[%s3 + $0x4] sm:$0xf] %v1946
    %1979 = vst [vmem:[%s3 + $0x8] sm:$0xf] %v1947
    %1980 = vst [vmem:[%s3 + $0xc] sm:$0xf] %v1948
    %1981 = vst [vmem:[%s3 + $0x10] sm:$0xf] %v1949
    %1982 = vst [vmem:[%s3 + $0x14] sm:$0xf] %v1950
    %1983 = vst [vmem:[%s3 + $0x18] sm:$0xf] %v1951
    %1984 = vst [vmem:[%s3 + $0x1c] sm:$0xf] %v1952
    %1985 = vst [vmem:[%s3 + $0x20] sm:$0xf] %v1953
    %1986 = vst [vmem:[%s3 + $0x24] sm:$0xf] %v1954
    %1987 = vst [vmem:[%s3 + $0x28] sm:$0xf] %v1955
    %1988 = vst [vmem:[%s3 + $0x2c] sm:$0xf] %v1956
    %1989 = vst [vmem:[%s3 + $0x30] sm:$0xf] %v1957
    %1990 = vst [vmem:[%s3 + $0x34] sm:$0xf] %v1958
    %1991 = vst [vmem:[%s3 + $0x38] sm:$0xf] %v1959
    %1992 = vst [vmem:[%s3 + $0x3c] sm:$0xf] %v1960
    %1993 = vst [vmem:[%s3 + $0x40] sm:$0xf] %v1961
    %1994 = vst [vmem:[%s3 + $0x44] sm:$0xf] %v1962
    %1995 = vst [vmem:[%s3 + $0x48] sm:$0xf] %v1963
    %1996 = vst [vmem:[%s3 + $0x4c] sm:$0xf] %v1964
    %1997 = vst [vmem:[%s3 + $0x50] sm:$0xf] %v1965
    %1998 = vst [vmem:[%s3 + $0x54] sm:$0xf] %v1966
    %1999 = vst [vmem:[%s3 + $0x58] sm:$0xf] %v1967
    %2000 = vst [vmem:[%s3 + $0x5c] sm:$0xf] %v1968
    %2001 = vst [vmem:[%s3 + $0x60] sm:$0xf] %v1969
    %2002 = vst [vmem:[%s3 + $0x64] sm:$0xf] %v1970
    %2003 = vst [vmem:[%s3 + $0x68] sm:$0xf] %v1971
    %2004 = vst [vmem:[%s3 + $0x6c] sm:$0xf] %v1972
    %2005 = vst [vmem:[%s3 + $0x70] sm:$0xf] %v1973
    %2006 = vst [vmem:[%s3 + $0x74] sm:$0xf] %v1974
    %2007 = vst [vmem:[%s3 + $0x78] sm:$0xf] %v1975
    %2008 = vst [vmem:[%s3 + $0x7c] sm:$0xf] %v1976
    // Predicated region
    $region18: #{_forward.1} parent=1 // pred_check
      _
    $region19: #{_forward.1} parent=1 // pred_check_branch
      %2010 = sbr.rel (0) target = $region21
    $region20: #{_forward.1} parent=1 // pred_region
      _
    $region21: #{_forward.1} parent=1 // pred_fallthru
      _
    // Predicated region
    $region22: #{_forward.1} parent=1 // pred_check
      _
    $region23: #{_forward.1} parent=1 // pred_check_branch
      %2012 = sbr.rel (0) target = $region25
    $region24: #{_forward.1} parent=1 // pred_region
      _
    $region25: #{_forward.1} parent=1 // pred_fallthru
      _
    %2013 = vsyncpa [#allocation3], 1

</llo_original>
